<compile_context>
chip_gen: v5e
topology: v5e:2x2
jax: 0.10.0
libtpu: 0.0.40
codegen_flags: <defaults>
</compile_context>

<pallas_src>
import functools

import jax
import jax.numpy as jnp
import numpy as np
from jax import lax
from jax.experimental import pallas as pl
from jax.experimental.pallas import tpu as pltpu

ELU_ALPHA = 10.0 / (10.0 - 1.0)   # nn.ELU(alpha=10/9)  (ste='clipped_elu')
BN_EPS = 1e-5


# ------------------------------ helpers --------------------------------------

def _elu(x):
    return jnp.where(x > 0, x, ELU_ALPHA * (jnp.exp(x) - 1.0))


def _binarize(wv):
    # sign binarization with 0 -> +1 (common BinarizeConv2d convention)
    return jnp.where(wv >= 0, 1.0, -1.0).astype(jnp.float32)


# ------------------------------ kernel ----------------------------------------

def basic_block_kernel(x_ref, t_ref, bn_ref, e_ref, et_ref, out_ref,
                       acc_ref, src_ref, *, n, h, w, c):
    """One grid step = one (stage s, kernel-row dy) pair.

    x_ref  : (N*H, W*C) f32   lane-dense NHWC input rows (resident; also residual)
    t_ref  : (W*C, W*C) bf16  binarized block-Toeplitz weights for (s, dy)
    bn_ref : (8, 128)   f32   stage slab: row0 = gamma, row1 = beta (first C lanes)
    e_ref  : (C, W*C)   f32   channel -> lane-dense expansion (E[c, ox*C+co]=d(c,co))
    et_ref : (W*C, C)   f32   lane-dense -> channel reduction (E^T)
    out_ref: (N*H, W*C) f32   written only at the final grid step
    acc_ref: (N*H, W*C) f32   conv accumulator (persists across dy steps)
    src_ref: (N*H, W*C) f32   current stage's input rows
    """
    nh = n * h
    wc = w * c
    s = pl.program_id(0)
    dy = pl.program_id(1)
    inv_count = 1.0 / float(n * h * w)          # BN statistic count (N*H*W)

    @pl.when((s == 0) & (dy == 0))
    def _():
        src_ref[...] = x_ref[...]               # stage-1 source

    @pl.when(dy == 0)
    def _():
        acc_ref[...] = jnp.zeros_like(acc_ref)  # zero accumulator at stage start

    src = src_ref[...]
    t = t_ref[...]                              # (W*C, W*C) bf16 for this (s, dy)
    row = lax.broadcasted_iota(jnp.int32, (nh, 1), 0)

    def accum(lhs):
        acc_ref[...] += jnp.dot(lhs.astype(jnp.bfloat16), t,
                                preferred_element_type=jnp.float32)

    # ---- 3x3 conv as three accumulating matmuls: input H row = out_h + dy - 1.
    # H zero-padding is a 1-row shift + per-image boundary mask; W padding is
    # already folded into the Toeplitz operand.
    @pl.when(dy == 0)
    def _():
        up = jnp.concatenate([jnp.zeros((1, wc), src.dtype), src[:-1, :]], axis=0)
        accum(jnp.where((row % h) != 0, up, 0.0))

    @pl.when(dy == 1)
    def _():
        accum(src)                              # no shift, no copy

    @pl.when(dy == 2)
    def _():
        dn = jnp.concatenate([src[1:, :], jnp.zeros((1, wc), src.dtype)], axis=0)
        accum(jnp.where((row % h) != (h - 1), dn, 0.0))

        # ---- stage finalize: BatchNorm2d (batch stats, biased var) then
        #      stage 0 -> ELU into src_ref, stage 1 -> +residual, ELU into out.
        acc = acc_ref[...]
        colsum = jnp.sum(acc, axis=0, keepdims=True)              # (1, W*C)
        colsumsq = jnp.sum(acc * acc, axis=0, keepdims=True)      # (1, W*C)
        csum = jnp.dot(colsum, et_ref[...],
                       preferred_element_type=jnp.float32)        # (1, C)
        csumsq = jnp.dot(colsumsq, et_ref[...],
                         preferred_element_type=jnp.float32)      # (1, C)
        mean = csum * inv_count
        var = csumsq * inv_count - mean * mean
        gamma = bn_ref[0:1, :c]
        beta = bn_ref[1:2, :c]
        scale = gamma * lax.rsqrt(var + BN_EPS)                   # (1, C)
        shift = beta - mean * scale                                # (1, C)
        scale_d = jnp.dot(scale, e_ref[...],
                          preferred_element_type=jnp.float32)     # (1, W*C)
        shift_d = jnp.dot(shift, e_ref[...],
                          preferred_element_type=jnp.float32)     # (1, W*C)
        y = acc * scale_d + shift_d

        @pl.when(s == 0)
        def _():
            src_ref[...] = _elu(y)              # becomes stage-2 input

        @pl.when(s == 1)
        def _():
            out_ref[...] = _elu(y + x_ref[...])  # residual add + final ELU


# --------------------------- parameter packing --------------------------------

def prepare_params(raw, h, w, c):
    """One-time weight plumbing (layout, not compute): binarize the 3x3 HWIO
    weights, fold W (and its zero padding) into per-(stage, dy) block-Toeplitz
    bf16 operands, and pack BN gamma/beta into one (8,128)-aligned per-stage
    slab.  Conv biases are intentionally dropped: a per-channel constant bias
    cancels exactly in training-mode BatchNorm mean subtraction."""
    def toeplitz(wraw):
        wb = _binarize(wraw)                                   # (3,3,Cin,Cout)
        rows = []
        for dyk in range(3):
            # T_dy[ix*C+ci, ox*C+co] = wb[dy,dx,ci,co] with ix = ox+dx-1 (in range)
            t = sum(jnp.kron(jnp.eye(w, w, k=1 - dx, dtype=jnp.float32),
                             wb[dyk, dx])
                    for dx in range(3))                        # (W*C, W*C)
            rows.append(t)
        return jnp.stack(rows, axis=0)                         # (3, W*C, W*C)

    t_all = jnp.stack([toeplitz(raw["w1"]), toeplitz(raw["w2"])],
                      axis=0).astype(jnp.bfloat16)             # (2,3,W*C,W*C), +/-1

    bn = jnp.zeros((2, 8, 128), jnp.float32)
    bn = bn.at[0, 0, :c].set(raw["g1"]).at[0, 1, :c].set(raw["be1"])
    bn = bn.at[1, 0, :c].set(raw["g2"]).at[1, 1, :c].set(raw["be2"])

    e = jnp.kron(jnp.ones((1, w), jnp.float32),
                 jnp.eye(c, dtype=jnp.float32))                # (C, W*C)

    return {"T": t_all, "bn": bn, "E": e, "Et": e.T}


# ------------------------------ wrapper ----------------------------------------

def basic_block_forward(x_nchw, packed):
    """x_nchw: (N, C, H, W) float32 -> (N, C, H, W) float32."""
    n, c, h, w = x_nchw.shape
    nh, wc = n * h, w * c
    xh = jnp.transpose(x_nchw, (0, 2, 3, 1)).astype(jnp.float32)   # NHWC
    x2d = xh.reshape(nh, wc)                                        # lane-dense rows

    kernel = functools.partial(basic_block_kernel, n=n, h=h, w=w, c=c)

    flops = int(2 * 2 * 3 * nh * wc * wc)                           # six conv matmuls
    bytes_accessed = int(packed["T"].size * 2 + packed["bn"].size * 4
                         + packed["E"].size * 4 + packed["Et"].size * 4
                         + 2 * nh * wc * 4)
    transcendentals = int(2 * nh * wc)                              # ELU exps

    out2d = pl.pallas_call(
        kernel,
        out_shape=jax.ShapeDtypeStruct((nh, wc), jnp.float32),
        grid=(2, 3),                                                # (stage, dy)
        in_specs=[
            pl.BlockSpec((nh, wc), lambda s, dy: (0, 0)),           # x (resident)
            pl.BlockSpec((None, None, wc, wc),
                         lambda s, dy: (s, dy, 0, 0)),              # one T block/step
            pl.BlockSpec((None, 8, 128), lambda s, dy: (s, 0, 0)),  # BN slab (stage)
            pl.BlockSpec((c, wc), lambda s, dy: (0, 0)),            # E  (resident)
            pl.BlockSpec((wc, c), lambda s, dy: (0, 0)),            # Et (resident)
        ],
        out_specs=pl.BlockSpec((nh, wc), lambda s, dy: (0, 0)),
        scratch_shapes=[pltpu.VMEM((nh, wc), jnp.float32),          # conv accumulator
                        pltpu.VMEM((nh, wc), jnp.float32)],         # stage source rows
        compiler_params=pltpu.CompilerParams(
            dimension_semantics=("arbitrary", "arbitrary")),
        cost_estimate=pl.CostEstimate(flops=flops,
                                      transcendentals=transcendentals,
                                      bytes_accessed=bytes_accessed),
    )(x2d, packed["T"], packed["bn"], packed["E"], packed["Et"])

    return jnp.transpose(out2d.reshape(n, h, w, c), (0, 3, 1, 2))   # back to NCHW


# --------------------------- pure-JAX reference --------------------------------

def reference_forward(x_nchw, raw):
    xh = jnp.transpose(x_nchw, (0, 2, 3, 1)).astype(jnp.float32)

    def conv(xin, wv, b):
        y = lax.conv_general_dilated(
            xin, _binarize(wv), (1, 1), ((1, 1), (1, 1)),
            dimension_numbers=("NHWC", "HWIO", "NHWC"),
            precision=lax.Precision.HIGHEST)
        return y + b.reshape(1, 1, 1, -1)

    def bn(y, g, be):
        m = y.mean(axis=(0, 1, 2))
        v = ((y - m) ** 2).mean(axis=(0, 1, 2))
        return (y - m) / jnp.sqrt(v + BN_EPS) * g.reshape(-1) + be.reshape(-1)

    o = _elu(bn(conv(xh, raw["w1"], raw["b1"]), raw["g1"], raw["be1"]))
    o = bn(conv(o, raw["w2"], raw["b2"]), raw["g2"], raw["be2"]) + xh
    o = _elu(o)
    return jnp.transpose(o, (0, 3, 1, 2))


# ------------------------------ main --------------------------------------------

if __name__ == "__main__":
    N, C, H, W = 2, 16, 16, 16           # in_chs = out_chs = 16, stride = 1
    key = jax.random.PRNGKey(0)
    kx, kw1, kb1, kw2, kb2 = jax.random.split(key, 5)

    x = jax.random.normal(kx, (N, C, H, W), jnp.float32)

    raw = {
        # conv weights in HWIO (3,3,Cin,Cout); binarized during packing
        "w1": jax.random.normal(kw1, (3, 3, C, C), jnp.float32),
        "b1": 0.01 * jax.random.normal(kb1, (C,), jnp.float32),
        "w2": jax.random.normal(kw2, (3, 3, C, C), jnp.float32),
        "b2": 0.01 * jax.random.normal(kb2, (C,), jnp.float32),
        # BatchNorm2d affine params at PyTorch init (gamma=1, beta=0)
        "g1": jnp.ones((C,), jnp.float32), "be1": jnp.zeros((C,), jnp.float32),
        "g2": jnp.ones((C,), jnp.float32), "be2": jnp.zeros((C,), jnp.float32),
    }

    packed = prepare_params(raw, H, W, C)

    out = jax.block_until_ready(basic_block_forward(x, packed))
    ref = jax.block_until_ready(reference_forward(x, raw))

    np.testing.assert_allclose(np.asarray(out), np.asarray(ref),
                               rtol=5e-2, atol=5e-2)
    assert out.shape == (N, C, H, W) and out.dtype == jnp.float32
    print("KERNEL_OK")
</pallas_src>

<mosaic_0001>
module attributes {stable_mosaic.version = 11 : i64} {
  func.func @basic_block_kernel(%arg0: i32, %arg1: i32, %arg2: memref<32x256xf32, #tpu.memory_space<vmem>>, %arg3: memref<1x1x256x256xbf16, #tpu.memory_space<vmem>>, %arg4: memref<1x8x128xf32, #tpu.memory_space<vmem>>, %arg5: memref<16x256xf32, #tpu.memory_space<vmem>>, %arg6: memref<256x16xf32, #tpu.memory_space<vmem>>, %arg7: memref<32x256xf32, #tpu.memory_space<vmem>>, %arg8: memref<32x256xf32, #tpu.memory_space<vmem>>, %arg9: memref<32x256xf32, #tpu.memory_space<vmem>>) attributes {dimension_semantics = [#tpu.dimension_semantics<arbitrary>, #tpu.dimension_semantics<arbitrary>], iteration_bounds = array<i64: 2, 3>, scalar_prefetch = 0 : i64, scratch_operands = 2 : i64, tpu.core_type = #tpu.core_type<tc>, window_params = [{pipeline_mode = #tpu.pipeline_mode<synchronous>, transform_indices = @transform_0, window_bounds = array<i64: 32, 256>}, {transform_indices = @transform_1, window_bounds = array<i64: 1, 1, 256, 256>}, {transform_indices = @transform_2, window_bounds = array<i64: 1, 8, 128>}, {pipeline_mode = #tpu.pipeline_mode<synchronous>, transform_indices = @transform_3, window_bounds = array<i64: 16, 256>}, {pipeline_mode = #tpu.pipeline_mode<synchronous>, transform_indices = @transform_4, window_bounds = array<i64: 256, 16>}, {pipeline_mode = #tpu.pipeline_mode<synchronous>, transform_indices = @transform_5, window_bounds = array<i64: 32, 256>}]} {
    %c0_i32 = arith.constant 0 : i32
    %0 = arith.cmpi eq, %arg0, %c0_i32 : i32
    %c0_i32_0 = arith.constant 0 : i32
    %1 = arith.cmpi eq, %arg1, %c0_i32_0 : i32
    %2 = arith.andi %0, %1 : i1
    %3 = arith.extui %2 : i1 to i32
    %c0_i32_1 = arith.constant 0 : i32
    %4 = arith.cmpi ne, %3, %c0_i32_1 : i32
    scf.if %4 {
      %c0_13 = arith.constant 0 : index
      %c0_14 = arith.constant 0 : index
      %21 = vector.load %arg2[%c0_13, %c0_14] : memref<32x256xf32, #tpu.memory_space<vmem>>, vector<32x256xf32>
      %c0_15 = arith.constant 0 : index
      %c0_16 = arith.constant 0 : index
      %22 = vector.load %arg9[%c0_15, %c0_16] : memref<32x256xf32, #tpu.memory_space<vmem>>, vector<32x256xf32>
      tpu.vector_store %arg9[%c0_15, %c0_16], %21 {strides = array<i32>} : memref<32x256xf32, #tpu.memory_space<vmem>>, vector<32x256xf32>,
    } else {
    }
    %c0_i32_2 = arith.constant 0 : i32
    %5 = arith.cmpi eq, %arg1, %c0_i32_2 : i32
    %6 = arith.extui %5 : i1 to i32
    %c0_i32_3 = arith.constant 0 : i32
    %7 = arith.cmpi ne, %6, %c0_i32_3 : i32
    scf.if %7 {
      %cst = arith.constant 0.000000e+00 : f32
      %21 = vector.broadcast %cst : f32 to vector<32x256xf32>
      %c0_13 = arith.constant 0 : index
      %c0_14 = arith.constant 0 : index
      %22 = vector.load %arg8[%c0_13, %c0_14] : memref<32x256xf32, #tpu.memory_space<vmem>>, vector<32x256xf32>
      tpu.vector_store %arg8[%c0_13, %c0_14], %21 {strides = array<i32>} : memref<32x256xf32, #tpu.memory_space<vmem>>, vector<32x256xf32>,
    } else {
    }
    %c0 = arith.constant 0 : index
    %c0_4 = arith.constant 0 : index
    %8 = vector.load %arg9[%c0, %c0_4] : memref<32x256xf32, #tpu.memory_space<vmem>>, vector<32x256xf32>
    %c0_5 = arith.constant 0 : index
    %c0_6 = arith.constant 0 : index
    %c0_7 = arith.constant 0 : index
    %c0_8 = arith.constant 0 : index
    %9 = vector.load %arg3[%c0_5, %c0_6, %c0_7, %c0_8] : memref<1x1x256x256xbf16, #tpu.memory_space<vmem>>, vector<1x1x256x256xbf16>
    %10 = vector.shape_cast %9 : vector<1x1x256x256xbf16> to vector<256x256xbf16>
    %11 = tpu.iota {dimensions = array<i32: 0>} : vector<32x1xi32>
    %c0_i32_9 = arith.constant 0 : i32
    %12 = arith.cmpi eq, %arg1, %c0_i32_9 : i32
    %13 = arith.extui %12 : i1 to i32
    %c0_i32_10 = arith.constant 0 : i32
    %14 = arith.cmpi ne, %13, %c0_i32_10 : i32
    scf.if %14 {
      %cst = arith.constant 0.000000e+00 : f32
      %21 = vector.broadcast %cst : f32 to vector<1x256xf32>
      %22 = vector.extract_strided_slice %8 {offsets = [0, 0], sizes = [31, 256], strides = [1, 1]} : vector<32x256xf32> to vector<31x256xf32>
      %23 = tpu.concatenate %21, %22 in 0 : vector<1x256xf32>, vector<31x256xf32> -> vector<32x256xf32>
      %c16_i32 = arith.constant 16 : i32
      %c0_i32_13 = arith.constant 0 : i32
      %24 = arith.cmpi eq, %c16_i32, %c0_i32_13 : i32
      %c1_i32_14 = arith.constant 1 : i32
      %25 = arith.select %24, %c1_i32_14, %c16_i32 : i32
      %26 = vector.broadcast %25 : i32 to vector<32x1xi32>
      %27 = arith.remsi %11, %26 : vector<32x1xi32>
      %c0_i32_15 = arith.constant 0 : i32
      %28 = vector.broadcast %c0_i32_15 : i32 to vector<32x1xi32>
      %29 = arith.cmpi ne, %27, %28 : vector<32x1xi32>
      %c0_i32_16 = arith.constant 0 : i32
      %30 = vector.broadcast %c0_i32_16 : i32 to vector<32x1xi32>
      %31 = arith.cmpi slt, %27, %30 : vector<32x1xi32>
      %c0_i32_17 = arith.constant 0 : i32
      %32 = arith.cmpi slt, %25, %c0_i32_17 : i32
      %33 = vector.broadcast %32 : i1 to vector<32x1xi1>
      %34 = vector.broadcast %33 : vector<32x1xi1> to vector<32x1xi1>
      %35 = arith.xori %31, %34 : vector<32x1xi1>
      %36 = arith.andi %35, %29 : vector<32x1xi1>
      %37 = vector.broadcast %25 : i32 to vector<32x1xi32>
      %38 = arith.addi %27, %37 : vector<32x1xi32>
      %39 = arith.select %36, %38, %27 : vector<32x1xi1>, vector<32x1xi32>
      %c0_i32_18 = arith.constant 0 : i32
      %40 = vector.broadcast %c0_i32_18 : i32 to vector<32x1xi32>
      %41 = arith.cmpi ne, %39, %40 : vector<32x1xi32>
      %cst_19 = arith.constant 0.000000e+00 : f32
      %42 = vector.shape_cast %41 : vector<32x1xi1> to vector<32x1xi1>
      %43 = vector.broadcast %42 : vector<32x1xi1> to vector<32x256xi1>
      %44 = vector.broadcast %cst_19 : f32 to vector<32x256xf32>
      %45 = arith.select %43, %23, %44 : vector<32x256xi1>, vector<32x256xf32>
      %c0_20 = arith.constant 0 : index
      %c0_21 = arith.constant 0 : index
      %46 = vector.load %arg8[%c0_20, %c0_21] : memref<32x256xf32, #tpu.memory_space<vmem>>, vector<32x256xf32>
      %47 = arith.truncf %45 : vector<32x256xf32> to vector<32x256xbf16>
      %cst_22 = arith.constant dense<0.000000e+00> : vector<32x256xf32>
      %48 = tpu.matmul %47, %10, %cst_22 {dimension_numbers = #tpu.dot_dimension_numbers<[1], [0], [0], [1], [0, 0, 1, 1], [], []>} : vector<32x256xbf16>, vector<256x256xbf16>, vector<32x256xf32> -> vector<32x256xf32>
      %49 = arith.addf %46, %48 : vector<32x256xf32>
      %c0_23 = arith.constant 0 : index
      %c0_24 = arith.constant 0 : index
      %50 = vector.load %arg8[%c0_23, %c0_24] : memref<32x256xf32, #tpu.memory_space<vmem>>, vector<32x256xf32>
      tpu.vector_store %arg8[%c0_23, %c0_24], %49 {strides = array<i32>} : memref<32x256xf32, #tpu.memory_space<vmem>>, vector<32x256xf32>,
    } else {
    }
    %c1_i32 = arith.constant 1 : i32
    %15 = arith.cmpi eq, %arg1, %c1_i32 : i32
    %16 = arith.extui %15 : i1 to i32
    %c0_i32_11 = arith.constant 0 : i32
    %17 = arith.cmpi ne, %16, %c0_i32_11 : i32
    scf.if %17 {
      %c0_13 = arith.constant 0 : index
      %c0_14 = arith.constant 0 : index
      %21 = vector.load %arg8[%c0_13, %c0_14] : memref<32x256xf32, #tpu.memory_space<vmem>>, vector<32x256xf32>
      %22 = arith.truncf %8 : vector<32x256xf32> to vector<32x256xbf16>
      %cst = arith.constant dense<0.000000e+00> : vector<32x256xf32>
      %23 = tpu.matmul %22, %10, %cst {dimension_numbers = #tpu.dot_dimension_numbers<[1], [0], [0], [1], [0, 0, 1, 1], [], []>} : vector<32x256xbf16>, vector<256x256xbf16>, vector<32x256xf32> -> vector<32x256xf32>
      %24 = arith.addf %21, %23 : vector<32x256xf32>
      %c0_15 = arith.constant 0 : index
      %c0_16 = arith.constant 0 : index
      %25 = vector.load %arg8[%c0_15, %c0_16] : memref<32x256xf32, #tpu.memory_space<vmem>>, vector<32x256xf32>
      tpu.vector_store %arg8[%c0_15, %c0_16], %24 {strides = array<i32>} : memref<32x256xf32, #tpu.memory_space<vmem>>, vector<32x256xf32>,
    } else {
    }
    %c2_i32 = arith.constant 2 : i32
    %18 = arith.cmpi eq, %arg1, %c2_i32 : i32
    %19 = arith.extui %18 : i1 to i32
    %c0_i32_12 = arith.constant 0 : i32
    %20 = arith.cmpi ne, %19, %c0_i32_12 : i32
    scf.if %20 {
      %21 = vector.extract_strided_slice %8 {offsets = [1, 0], sizes = [31, 256], strides = [1, 1]} : vector<32x256xf32> to vector<31x256xf32>
      %cst = arith.constant 0.000000e+00 : f32
      %22 = vector.broadcast %cst : f32 to vector<1x256xf32>
      %23 = tpu.concatenate %21, %22 in 0 : vector<31x256xf32>, vector<1x256xf32> -> vector<32x256xf32>
      %c16_i32 = arith.constant 16 : i32
      %c0_i32_13 = arith.constant 0 : i32
      %24 = arith.cmpi eq, %c16_i32, %c0_i32_13 : i32
      %c1_i32_14 = arith.constant 1 : i32
      %25 = arith.select %24, %c1_i32_14, %c16_i32 : i32
      %26 = vector.broadcast %25 : i32 to vector<32x1xi32>
      %27 = arith.remsi %11, %26 : vector<32x1xi32>
      %c0_i32_15 = arith.constant 0 : i32
      %28 = vector.broadcast %c0_i32_15 : i32 to vector<32x1xi32>
      %29 = arith.cmpi ne, %27, %28 : vector<32x1xi32>
      %c0_i32_16 = arith.constant 0 : i32
      %30 = vector.broadcast %c0_i32_16 : i32 to vector<32x1xi32>
      %31 = arith.cmpi slt, %27, %30 : vector<32x1xi32>
      %c0_i32_17 = arith.constant 0 : i32
      %32 = arith.cmpi slt, %25, %c0_i32_17 : i32
      %33 = vector.broadcast %32 : i1 to vector<32x1xi1>
      %34 = vector.broadcast %33 : vector<32x1xi1> to vector<32x1xi1>
      %35 = arith.xori %31, %34 : vector<32x1xi1>
      %36 = arith.andi %35, %29 : vector<32x1xi1>
      %37 = vector.broadcast %25 : i32 to vector<32x1xi32>
      %38 = arith.addi %27, %37 : vector<32x1xi32>
      %39 = arith.select %36, %38, %27 : vector<32x1xi1>, vector<32x1xi32>
      %c15_i32 = arith.constant 15 : i32
      %40 = vector.broadcast %c15_i32 : i32 to vector<32x1xi32>
      %41 = arith.cmpi ne, %39, %40 : vector<32x1xi32>
      %cst_18 = arith.constant 0.000000e+00 : f32
      %42 = vector.shape_cast %41 : vector<32x1xi1> to vector<32x1xi1>
      %43 = vector.broadcast %42 : vector<32x1xi1> to vector<32x256xi1>
      %44 = vector.broadcast %cst_18 : f32 to vector<32x256xf32>
      %45 = arith.select %43, %23, %44 : vector<32x256xi1>, vector<32x256xf32>
      %c0_19 = arith.constant 0 : index
      %c0_20 = arith.constant 0 : index
      %46 = vector.load %arg8[%c0_19, %c0_20] : memref<32x256xf32, #tpu.memory_space<vmem>>, vector<32x256xf32>
      %47 = arith.truncf %45 : vector<32x256xf32> to vector<32x256xbf16>
      %cst_21 = arith.constant dense<0.000000e+00> : vector<32x256xf32>
      %48 = tpu.matmul %47, %10, %cst_21 {dimension_numbers = #tpu.dot_dimension_numbers<[1], [0], [0], [1], [0, 0, 1, 1], [], []>} : vector<32x256xbf16>, vector<256x256xbf16>, vector<32x256xf32> -> vector<32x256xf32>
      %49 = arith.addf %46, %48 : vector<32x256xf32>
      %c0_22 = arith.constant 0 : index
      %c0_23 = arith.constant 0 : index
      %50 = vector.load %arg8[%c0_22, %c0_23] : memref<32x256xf32, #tpu.memory_space<vmem>>, vector<32x256xf32>
      tpu.vector_store %arg8[%c0_22, %c0_23], %49 {strides = array<i32>} : memref<32x256xf32, #tpu.memory_space<vmem>>, vector<32x256xf32>,
      %c0_24 = arith.constant 0 : index
      %c0_25 = arith.constant 0 : index
      %51 = vector.load %arg8[%c0_24, %c0_25] : memref<32x256xf32, #tpu.memory_space<vmem>>, vector<32x256xf32>
      %cst_26 = arith.constant dense<0.000000e+00> : vector<256xf32>
      %52 = vector.multi_reduction <add>, %51, %cst_26 [0] : vector<32x256xf32> to vector<256xf32>
      %53 = vector.shape_cast %52 : vector<256xf32> to vector<1x256xf32>
      %54 = arith.mulf %51, %51 : vector<32x256xf32>
      %cst_27 = arith.constant dense<0.000000e+00> : vector<256xf32>
      %55 = vector.multi_reduction <add>, %54, %cst_27 [0] : vector<32x256xf32> to vector<256xf32>
      %56 = vector.shape_cast %55 : vector<256xf32> to vector<1x256xf32>
      %c0_28 = arith.constant 0 : index
      %c0_29 = arith.constant 0 : index
      %57 = vector.load %arg6[%c0_28, %c0_29] : memref<256x16xf32, #tpu.memory_space<vmem>>, vector<256x16xf32>
      %cst_30 = arith.constant dense<0.000000e+00> : vector<1x16xf32>
      %58 = tpu.matmul %53, %57, %cst_30 {dimension_numbers = #tpu.dot_dimension_numbers<[1], [0], [0], [1], [0, 0, 1, 1], [], []>} : vector<1x256xf32>, vector<256x16xf32>, vector<1x16xf32> -> vector<1x16xf32>
      %c0_31 = arith.constant 0 : index
      %c0_32 = arith.constant 0 : index
      %59 = vector.load %arg6[%c0_31, %c0_32] : memref<256x16xf32, #tpu.memory_space<vmem>>, vector<256x16xf32>
      %cst_33 = arith.constant dense<0.000000e+00> : vector<1x16xf32>
      %60 = tpu.matmul %56, %59, %cst_33 {dimension_numbers = #tpu.dot_dimension_numbers<[1], [0], [0], [1], [0, 0, 1, 1], [], []>} : vector<1x256xf32>, vector<256x16xf32>, vector<1x16xf32> -> vector<1x16xf32>
      %cst_34 = arith.constant 0.001953125 : f32
      %61 = vector.broadcast %cst_34 : f32 to vector<1x16xf32>
      %62 = arith.mulf %58, %61 : vector<1x16xf32>
      %cst_35 = arith.constant 0.001953125 : f32
      %63 = vector.broadcast %cst_35 : f32 to vector<1x16xf32>
      %64 = arith.mulf %60, %63 : vector<1x16xf32>
      %65 = arith.mulf %62, %62 : vector<1x16xf32>
      %66 = arith.subf %64, %65 : vector<1x16xf32>
      %c0_36 = arith.constant 0 : index
      %c0_37 = arith.constant 0 : index
      %c0_38 = arith.constant 0 : index
      %67 = vector.load %arg4[%c0_36, %c0_37, %c0_38] : memref<1x8x128xf32, #tpu.memory_space<vmem>>, vector<1x1x16xf32>
      %68 = vector.shape_cast %67 : vector<1x1x16xf32> to vector<1x16xf32>
      %c0_39 = arith.constant 0 : index
      %c1 = arith.constant 1 : index
      %c0_40 = arith.constant 0 : index
      %69 = vector.load %arg4[%c0_39, %c1, %c0_40] : memref<1x8x128xf32, #tpu.memory_space<vmem>>, vector<1x1x16xf32>
      %70 = vector.shape_cast %69 : vector<1x1x16xf32> to vector<1x16xf32>
      %cst_41 = arith.constant 9.99999974E-6 : f32
      %71 = vector.broadcast %cst_41 : f32 to vector<1x16xf32>
      %72 = arith.addf %66, %71 : vector<1x16xf32>
      %73 = math.rsqrt %72 : vector<1x16xf32>
      %74 = arith.mulf %68, %73 : vector<1x16xf32>
      %75 = arith.mulf %62, %74 : vector<1x16xf32>
      %76 = arith.subf %70, %75 : vector<1x16xf32>
      %c0_42 = arith.constant 0 : index
      %c0_43 = arith.constant 0 : index
      %77 = vector.load %arg5[%c0_42, %c0_43] : memref<16x256xf32, #tpu.memory_space<vmem>>, vector<16x256xf32>
      %cst_44 = arith.constant dense<0.000000e+00> : vector<1x256xf32>
      %78 = tpu.matmul %74, %77, %cst_44 {dimension_numbers = #tpu.dot_dimension_numbers<[1], [0], [0], [1], [0, 0, 1, 1], [], []>} : vector<1x16xf32>, vector<16x256xf32>, vector<1x256xf32> -> vector<1x256xf32>
      %c0_45 = arith.constant 0 : index
      %c0_46 = arith.constant 0 : index
      %79 = vector.load %arg5[%c0_45, %c0_46] : memref<16x256xf32, #tpu.memory_space<vmem>>, vector<16x256xf32>
      %cst_47 = arith.constant dense<0.000000e+00> : vector<1x256xf32>
      %80 = tpu.matmul %76, %79, %cst_47 {dimension_numbers = #tpu.dot_dimension_numbers<[1], [0], [0], [1], [0, 0, 1, 1], [], []>} : vector<1x16xf32>, vector<16x256xf32>, vector<1x256xf32> -> vector<1x256xf32>
      %81 = vector.broadcast %78 : vector<1x256xf32> to vector<32x256xf32>
      %82 = arith.mulf %51, %81 : vector<32x256xf32>
      %83 = vector.broadcast %80 : vector<1x256xf32> to vector<32x256xf32>
      %84 = arith.addf %82, %83 : vector<32x256xf32>
      %c0_i32_48 = arith.constant 0 : i32
      %85 = arith.cmpi eq, %arg0, %c0_i32_48 : i32
      %86 = arith.extui %85 : i1 to i32
      %c0_i32_49 = arith.constant 0 : i32
      %87 = arith.cmpi ne, %86, %c0_i32_49 : i32
      scf.if %87 {
        %cst_52 = arith.constant 0.000000e+00 : f32
        %91 = vector.broadcast %cst_52 : f32 to vector<32x256xf32>
        %92 = arith.cmpf ogt, %84, %91 : vector<32x256xf32>
        %93 = math.exp %84 : vector<32x256xf32>
        %cst_53 = arith.constant 1.000000e+00 : f32
        %94 = vector.broadcast %cst_53 : f32 to vector<32x256xf32>
        %95 = arith.subf %93, %94 : vector<32x256xf32>
        %cst_54 = arith.constant 1.11111116 : f32
        %96 = vector.broadcast %cst_54 : f32 to vector<32x256xf32>
        %97 = arith.mulf %96, %95 : vector<32x256xf32>
        %98 = arith.select %92, %84, %97 : vector<32x256xi1>, vector<32x256xf32>
        %c0_55 = arith.constant 0 : index
        %c0_56 = arith.constant 0 : index
        %99 = vector.load %arg9[%c0_55, %c0_56] : memref<32x256xf32, #tpu.memory_space<vmem>>, vector<32x256xf32>
        tpu.vector_store %arg9[%c0_55, %c0_56], %98 {strides = array<i32>} : memref<32x256xf32, #tpu.memory_space<vmem>>, vector<32x256xf32>,
      } else {
      }
      %c1_i32_50 = arith.constant 1 : i32
      %88 = arith.cmpi eq, %arg0, %c1_i32_50 : i32
      %89 = arith.extui %88 : i1 to i32
      %c0_i32_51 = arith.constant 0 : i32
      %90 = arith.cmpi ne, %89, %c0_i32_51 : i32
      scf.if %90 {
        %c0_52 = arith.constant 0 : index
        %c0_53 = arith.constant 0 : index
        %91 = vector.load %arg2[%c0_52, %c0_53] : memref<32x256xf32, #tpu.memory_space<vmem>>, vector<32x256xf32>
        %92 = arith.addf %84, %91 : vector<32x256xf32>
        %cst_54 = arith.constant 0.000000e+00 : f32
        %93 = vector.broadcast %cst_54 : f32 to vector<32x256xf32>
        %94 = arith.cmpf ogt, %92, %93 : vector<32x256xf32>
        %95 = math.exp %92 : vector<32x256xf32>
        %cst_55 = arith.constant 1.000000e+00 : f32
        %96 = vector.broadcast %cst_55 : f32 to vector<32x256xf32>
        %97 = arith.subf %95, %96 : vector<32x256xf32>
        %cst_56 = arith.constant 1.11111116 : f32
        %98 = vector.broadcast %cst_56 : f32 to vector<32x256xf32>
        %99 = arith.mulf %98, %97 : vector<32x256xf32>
        %100 = arith.select %94, %92, %99 : vector<32x256xi1>, vector<32x256xf32>
        %c0_57 = arith.constant 0 : index
        %c0_58 = arith.constant 0 : index
        %101 = vector.load %arg7[%c0_57, %c0_58] : memref<32x256xf32, #tpu.memory_space<vmem>>, vector<32x256xf32>
        tpu.vector_store %arg7[%c0_57, %c0_58], %100 {strides = array<i32>} : memref<32x256xf32, #tpu.memory_space<vmem>>, vector<32x256xf32>,
      } else {
      }
    } else {
    }
    return
  }
  func.func @transform_0(%arg0: i32, %arg1: i32) -> (i32, i32) {
    %c0_i32 = arith.constant 0 : i32
    %c0_i32_0 = arith.constant 0 : i32
    %c0_i32_1 = arith.constant 0 : i32
    return %c0_i32, %c0_i32_0 : i32, i32
  }
  func.func @transform_1(%arg0: i32, %arg1: i32) -> (i32, i32, i32, i32) {
    %c0_i32 = arith.constant 0 : i32
    %c0_i32_0 = arith.constant 0 : i32
    %c0_i32_1 = arith.constant 0 : i32
    return %arg0, %arg1, %c0_i32, %c0_i32_0 : i32, i32, i32, i32
  }
  func.func @transform_2(%arg0: i32, %arg1: i32) -> (i32, i32, i32) {
    %c0_i32 = arith.constant 0 : i32
    %c0_i32_0 = arith.constant 0 : i32
    %c0_i32_1 = arith.constant 0 : i32
    return %arg0, %c0_i32, %c0_i32_0 : i32, i32, i32
  }
  func.func @transform_3(%arg0: i32, %arg1: i32) -> (i32, i32) {
    %c0_i32 = arith.constant 0 : i32
    %c0_i32_0 = arith.constant 0 : i32
    %c0_i32_1 = arith.constant 0 : i32
    return %c0_i32, %c0_i32_0 : i32, i32
  }
  func.func @transform_4(%arg0: i32, %arg1: i32) -> (i32, i32) {
    %c0_i32 = arith.constant 0 : i32
    %c0_i32_0 = arith.constant 0 : i32
    %c0_i32_1 = arith.constant 0 : i32
    return %c0_i32, %c0_i32_0 : i32, i32
  }
  func.func @transform_5(%arg0: i32, %arg1: i32) -> (i32, i32) {
    %c0_i32 = arith.constant 0 : i32
    %c0_i32_0 = arith.constant 0 : i32
    %c0_i32_1 = arith.constant 0 : i32
    return %c0_i32, %c0_i32_0 : i32, i32
  }
}

</mosaic_0001>

<llo_original>
// kernel: tpu_custom_call.1
$region0: #{tpu_custom_call.1}
  #allocation0 [shape = 'u32[]', space=smem, size = 0x4, offset = 0x4, fixed_abs, tag = 'smem constant byte address 0x4 - core index']
  #allocation1 [shape = 'u32[72,128]{1,0:T(1,128)}', space=vmem, size = 0x9000, scoped, tag = 'internal scratch']
  #allocation2 [shape = 'f32[32,256]{1,0:T(8,128)}', space=vmem, size = 0x8000, scoped, tag = 'scratch operand']
  #allocation3 [shape = 'f32[32,256]{1,0:T(8,128)}', space=vmem, size = 0x8000, scoped, tag = 'scratch operand']
  %s0 = inlined_call_operand.vmem [shape: f32[32,256], index: 0, kind: input, shape index: {}]
  %s1 = inlined_call_operand.hbm [shape: bf16[2,3,256,256], index: 1, kind: input, shape index: {}]
  %s2 = inlined_call_operand.vmem [shape: f32[2,8,128], index: 2, kind: input, shape index: {}]
  %s3 = inlined_call_operand.vmem [shape: f32[16,256], index: 3, kind: input, shape index: {}]
  %s4 = inlined_call_operand.vmem [shape: f32[256,16], index: 4, kind: input, shape index: {}]
  %s5 = inlined_call_operand.hbm [shape: f32[32,256], index: 5, kind: output, shape index: {}]
  %s6 = sld [smem:[#allocation0]]
  $region85: #{tpu_custom_call.1} parent=0
    _
  %s8 = ssub.s32 1, %s6
  %s9 = scalar_select 0, %s8, %s6
  $region1: #{tpu_custom_call.1} parent=0
    #allocation4 [shape = 'u8[262144]{0}', space=vmem, size = 0x40000, scoped, tag = 'input window, operand 1']
    #allocation5 [shape = 's32[2]{0}', space=sflag, size = 0x8, scoped, tag = 'scoped memory for tpu_custom_call.1']
    #allocation6 [shape = 's32[2]{0}', space=sflag, size = 0x8, scoped, tag = 'scoped memory for tpu_custom_call.1']
    #allocation7 [shape = 'u8[32768]{0}', space=vmem, size = 0x8000, scoped, tag = 'output window, operand 0, single buffered']
    %10 = vsyncpa [#allocation5], 0
    %s11 = scalar_lea.sflag [#allocation5], 1
    %12 = vsyncpa %s11, 0
    %13 = vsyncpa [#allocation6], 0
    loop: start=0, step=1, limit=8
    $region2: #{tpu_custom_call.1} parent=1 // loop_pre_header
      _
    $region3: #{tpu_custom_call.1} parent=1 // loop_header
      %s15 = sphi 0, %s19
      %p16 = scmp.ge.s32.totalorder %s15, 8
      %s22 = sphi 0, %s34
      %s23 = sphi 0, %s30
      %s24 = sphi 0, %s22
      %s25 = sphi 0, %s23
      %s26 = sphi 0, %s24
      %s27 = sphi 0, %s25
      %s35 = sphi 0, %s35
      %s37 = sphi 0, %s35
      %s38 = sphi 0, %s37
      %s52 = sphi 0, %s38
      %s60 = sphi 0, %s62
      %s63 = sphi 0, %s60
      %s64 = sphi 0, %s63
      %s80 = sphi 0, %s64
      %s86 = sphi 0, %s88
      %s89 = sphi 0, %s86
      %s90 = sphi 0, %s89
      %s106 = sphi 0, %s90
      %s110 = sphi 0, %s110
      %s112 = sphi 0, %s110
      %s113 = sphi 0, %s112
      %s127 = sphi 0, %s113
      %s131 = sphi 0, %s131
      %s133 = sphi 0, %s131
      %s134 = sphi 0, %s133
      %s148 = sphi 0, %s134
      %s152 = sphi 0, %s152
      %s154 = sphi 0, %s152
      %s155 = sphi 0, %s154
      %s169 = sphi 0, %s155
    $region4: #{tpu_custom_call.1} parent=1 // loop_header_branch
      %18 = sbr.rel (%p16) target = $region8
    $region5: #{tpu_custom_call.1} parent=1 // loop_body
      %s20 = ssub.s32 %s15, 1
      %s21 = ssub.s32 %s15, 2
      %s28 = sadd.s32 1, %s23
      %p29 = scmp.ge.s32.totalorder %s28, 3
      %s30 = scalar_select %p29, 0, %s28
      %s31 = sadd.s32 1, %s22
      %s32 = scalar_select %p29, %s31, %s22
      %p33 = scmp.ge.s32.totalorder %s32, 2
      %s34 = scalar_select %p33, 0, %s32
      %s36 = sadd.s32 %s35, 1
      %p39 = scmp.eq.s32.totalorder %s15, 5
      %p40 = scmp.ne.s32.totalorder %s35, %s37
      %p41 = scmp.eq.s32.totalorder %s15, 0
      %p42 = por %p40, %p41
      %p43 = scmp.ne.s32.totalorder %s35, %s37
      %p44 = scmp.eq.s32.totalorder %s20, 5
      %p45 = por %p43, %p44
      %p46 = scmp.ne.s32.totalorder %s37, %s38
      %p47 = scmp.eq.s32.totalorder %s20, 0
      %p48 = por %p46, %p47
      %p49 = scmp.ne.s32.totalorder %s37, %s38
      %p50 = scmp.eq.s32.totalorder %s21, 5
      %p51 = por %p49, %p50
      %p53 = scmp.ne.s32.totalorder %s38, %s52
      %p54 = scmp.eq.s32.totalorder %s21, 0
      %p55 = por %p53, %p54
      %s56 = ssub.s32 %s22, %s34
      %s57 = ssub.s32 %s23, %s30
      %s58 = sor.u32 %s56, %s57
      %p59 = scmp.eq.s32.totalorder %s58, 0
      %s61 = sadd.s32 %s60, 1
      %s62 = scalar_select %p59, %s60, %s61
      %p65 = pneg %p59
      %p66 = scmp.eq.s32.totalorder %s15, 5
      %p67 = por %p65, %p66
      %p68 = scmp.ne.s32.totalorder %s60, %s63
      %p69 = scmp.eq.s32.totalorder %s15, 0
      %p70 = por %p68, %p69
      %p71 = scmp.ne.s32.totalorder %s60, %s63
      %p72 = scmp.eq.s32.totalorder %s20, 5
      %p73 = por %p71, %p72
      %p74 = scmp.ne.s32.totalorder %s63, %s64
      %p75 = scmp.eq.s32.totalorder %s20, 0
      %p76 = por %p74, %p75
      %p77 = scmp.ne.s32.totalorder %s63, %s64
      %p78 = scmp.eq.s32.totalorder %s21, 5
      %p79 = por %p77, %p78
      %p81 = scmp.ne.s32.totalorder %s64, %s80
      %p82 = scmp.eq.s32.totalorder %s21, 0
      %p83 = por %p81, %p82
      %s84 = ssub.s32 %s22, %s34
      %p85 = scmp.eq.s32.totalorder %s84, 0
      %s87 = sadd.s32 %s86, 1
      %s88 = scalar_select %p85, %s86, %s87
      %p91 = pneg %p85
      %p92 = scmp.eq.s32.totalorder %s15, 5
      %p93 = por %p91, %p92
      %p94 = scmp.ne.s32.totalorder %s86, %s89
      %p95 = scmp.eq.s32.totalorder %s15, 0
      %p96 = por %p94, %p95
      %p97 = scmp.ne.s32.totalorder %s86, %s89
      %p98 = scmp.eq.s32.totalorder %s20, 5
      %p99 = por %p97, %p98
      %p100 = scmp.ne.s32.totalorder %s89, %s90
      %p101 = scmp.eq.s32.totalorder %s20, 0
      %p102 = por %p100, %p101
      %p103 = scmp.ne.s32.totalorder %s89, %s90
      %p104 = scmp.eq.s32.totalorder %s21, 5
      %p105 = por %p103, %p104
      %p107 = scmp.ne.s32.totalorder %s90, %s106
      %p108 = scmp.eq.s32.totalorder %s21, 0
      %p109 = por %p107, %p108
      %s111 = sadd.s32 %s110, 1
      %p114 = scmp.eq.s32.totalorder %s15, 5
      %p115 = scmp.ne.s32.totalorder %s110, %s112
      %p116 = scmp.eq.s32.totalorder %s15, 0
      %p117 = por %p115, %p116
      %p118 = scmp.ne.s32.totalorder %s110, %s112
      %p119 = scmp.eq.s32.totalorder %s20, 5
      %p120 = por %p118, %p119
      %p121 = scmp.ne.s32.totalorder %s112, %s113
      %p122 = scmp.eq.s32.totalorder %s20, 0
      %p123 = por %p121, %p122
      %p124 = scmp.ne.s32.totalorder %s112, %s113
      %p125 = scmp.eq.s32.totalorder %s21, 5
      %p126 = por %p124, %p125
      %p128 = scmp.ne.s32.totalorder %s113, %s127
      %p129 = scmp.eq.s32.totalorder %s21, 0
      %p130 = por %p128, %p129
      %s132 = sadd.s32 %s131, 1
      %p135 = scmp.eq.s32.totalorder %s15, 5
      %p136 = scmp.ne.s32.totalorder %s131, %s133
      %p137 = scmp.eq.s32.totalorder %s15, 0
      %p138 = por %p136, %p137
      %p139 = scmp.ne.s32.totalorder %s131, %s133
      %p140 = scmp.eq.s32.totalorder %s20, 5
      %p141 = por %p139, %p140
      %p142 = scmp.ne.s32.totalorder %s133, %s134
      %p143 = scmp.eq.s32.totalorder %s20, 0
      %p144 = por %p142, %p143
      %p145 = scmp.ne.s32.totalorder %s133, %s134
      %p146 = scmp.eq.s32.totalorder %s21, 5
      %p147 = por %p145, %p146
      %p149 = scmp.ne.s32.totalorder %s134, %s148
      %p150 = scmp.eq.s32.totalorder %s21, 0
      %p151 = por %p149, %p150
      %s153 = sadd.s32 %s152, 1
      %p156 = scmp.eq.s32.totalorder %s15, 5
      %p157 = scmp.ne.s32.totalorder %s152, %s154
      %p158 = scmp.eq.s32.totalorder %s15, 0
      %p159 = por %p157, %p158
      %p160 = scmp.ne.s32.totalorder %s152, %s154
      %p161 = scmp.eq.s32.totalorder %s20, 5
      %p162 = por %p160, %p161
      %p163 = scmp.ne.s32.totalorder %s154, %s155
      %p164 = scmp.eq.s32.totalorder %s20, 0
      %p165 = por %p163, %p164
      %p166 = scmp.ne.s32.totalorder %s154, %s155
      %p167 = scmp.eq.s32.totalorder %s21, 5
      %p168 = por %p166, %p167
      %p170 = scmp.ne.s32.totalorder %s155, %s169
      %p171 = scmp.eq.s32.totalorder %s21, 0
      %p172 = por %p170, %p171
      %p173 = scmp.le.s32.totalorder 1, %s15
      %p174 = scmp.lt.s32.totalorder %s15, 7
      %p175 = pnand %p173, %p174
      %p176 = pneg %p175
      // Predicated region
      $region9: #{tpu_custom_call.1} parent=5 // pred_check
        _
      $region10: #{tpu_custom_call.1} parent=5 // pred_check_branch
        %178 = sbr.rel (%p175) target = $region12
      $region11: #{tpu_custom_call.1} parent=5 // pred_region
        %s179 = ssub.s32 %s15, 1
        // Predicated region
        $region13: #{tpu_custom_call.1} parent=11 // pred_check
          %p180 = pneg %p48
        $region14: #{tpu_custom_call.1} parent=11 // pred_check_branch
          %182 = sbr.rel (%p180) target = $region16
        $region15: #{tpu_custom_call.1} parent=11 // pred_region
          _
        $region16: #{tpu_custom_call.1} parent=11 // pred_fallthru
          _
        // Predicated region
        $region17: #{tpu_custom_call.1} parent=11 // pred_check
          %p183 = pneg %p123
        $region18: #{tpu_custom_call.1} parent=11 // pred_check_branch
          %185 = sbr.rel (%p183) target = $region20
        $region19: #{tpu_custom_call.1} parent=11 // pred_region
          _
        $region20: #{tpu_custom_call.1} parent=11 // pred_fallthru
          _
        // Predicated region
        $region21: #{tpu_custom_call.1} parent=11 // pred_check
          %p186 = pneg %p144
        $region22: #{tpu_custom_call.1} parent=11 // pred_check_branch
          %188 = sbr.rel (%p186) target = $region24
        $region23: #{tpu_custom_call.1} parent=11 // pred_region
          _
        $region24: #{tpu_custom_call.1} parent=11 // pred_fallthru
          _
      $region12: #{tpu_custom_call.1} parent=5 // pred_fallthru
        _
      %p189 = scmp.lt.s32.totalorder %s15, 6
      // Predicated region
      $region25: #{tpu_custom_call.1} parent=5 // pred_check
        %p190 = pneg %p189
      $region26: #{tpu_custom_call.1} parent=5 // pred_check_branch
        %192 = sbr.rel (%p190) target = $region28
      $region27: #{tpu_custom_call.1} parent=5 // pred_region
        // Predicated region
        $region29: #{tpu_custom_call.1} parent=27 // pred_check
          %p193 = pneg %p70
        $region30: #{tpu_custom_call.1} parent=27 // pred_check_branch
          %195 = sbr.rel (%p193) target = $region32
        $region31: #{tpu_custom_call.1} parent=27 // pred_region
          %s196 = sand.u32 %s60, 1
          %s197 = scalar_lea.sflag [#allocation5], %s196
          %s198 = sand.u32 %s60, 1
          %s199 = smul.addr %s198, 256
          %s200 = scalar_lea.vmem [#allocation4], %s199
          %202 = vsyncadd %s197, 0
          %s203 = smul.addr %s23, 64
          %s204 = smul.addr %s22, 192
          %s205 = sadd.s32 %s203, %s204
          %s206 = smul.addr %s205, 4
          %s207 = scalar_lea.hbm %s1, %s206
          %s208 = sshll.u32 %s207, 4
          %s209 = int_to_ptr.hbm [resolvable:$true] %s208
          %s210 = sshll.u32 %s200, 4
          %s211 = int_to_ptr.vmem [resolvable:$true] %s210
          %216 = dma.hbm_to_vmem [thread:$0]  %s209, 4096, %s211, %s197, 128, 128, 8
        $region32: #{tpu_custom_call.1} parent=27 // pred_fallthru
          _
        // Predicated region
        $region33: #{tpu_custom_call.1} parent=27 // pred_check
          %p217 = pneg %p96
        $region34: #{tpu_custom_call.1} parent=27 // pred_check_branch
          %219 = sbr.rel (%p217) target = $region36
        $region35: #{tpu_custom_call.1} parent=27 // pred_region
          %p220 = scmp.lt.s32.totalorder %s22, 1
          %s221 = scalar_select %p220, %s22, 1
          %s222 = smul.addr %s221, 8
          %s223 = scalar_lea.vmem %s2, %s222
        $region36: #{tpu_custom_call.1} parent=27 // pred_fallthru
          _
      $region28: #{tpu_custom_call.1} parent=5 // pred_fallthru
        _
      %p224 = scmp.le.s32.totalorder 1, %s15
      %p225 = scmp.lt.s32.totalorder %s15, 7
      %p226 = pnand %p224, %p225
      %p227 = pneg %p226
      // Predicated region
      $region37: #{tpu_custom_call.1} parent=5 // pred_check
        _
      $region38: #{tpu_custom_call.1} parent=5 // pred_check_branch
        %229 = sbr.rel (%p226) target = $region40
      $region39: #{tpu_custom_call.1} parent=5 // pred_region
        %s230 = ssub.s32 %s15, 1
        %s231 = sand.u32 %s63, 1
        %s232 = scalar_lea.sflag [#allocation5], %s231
        %s233 = sand.u32 %s63, 1
        %s234 = smul.addr %s233, 256
        %s235 = scalar_lea.vmem [#allocation4], %s234
        // Predicated region
        $region41: #{tpu_custom_call.1} parent=39 // pred_check
          %p236 = pneg %p76
        $region42: #{tpu_custom_call.1} parent=39 // pred_check_branch
          %238 = sbr.rel (%p236) target = $region44
        $region43: #{tpu_custom_call.1} parent=39 // pred_region
          %240 = dma.done %s232, 4096
        $region44: #{tpu_custom_call.1} parent=39 // pred_fallthru
          _
        %p241 = pneg %p48
        %p242 = pneg %p45
        %s243 = sand.u32 %s63, 1
        %s244 = scalar_lea.sflag [#allocation5], %s243
        %s245 = sand.u32 %s63, 1
        %s246 = smul.addr %s245, 256
        %s247 = scalar_lea.vmem [#allocation4], %s246
        %p248 = pneg %p76
        %p249 = pneg %p73
        %p250 = scmp.lt.s32.totalorder %s24, 1
        %s251 = scalar_select %p250, %s24, 1
        %s252 = smul.addr %s251, 8
        %s253 = scalar_lea.vmem %s2, %s252
        %p254 = pneg %p102
        %p255 = pneg %p99
        %p256 = pneg %p123
        %p257 = pneg %p120
        %p258 = pneg %p144
        %p259 = pneg %p141
        %p260 = pneg %p165
        %p261 = pneg %p162
        %p262 = scmp.lt.s32.totalorder %s24, 1
        %s263 = scalar_select %p262, %s24, 1
        %s264 = smul.addr %s263, 8
        %s265 = scalar_lea.vmem %s2, %s264
        %p266 = scmp.eq.s32.totalorder %s24, 0
        %p267 = scmp.eq.s32.totalorder %s25, 0
        %p268 = pnand %p266, %p267
        %p269 = pneg %p268
        // Predicated region
        $region45: #{tpu_custom_call.1} parent=39 // pred_check
          _
        $region46: #{tpu_custom_call.1} parent=39 // pred_check_branch
          %271 = sbr.rel (%p268) target = $region48
        $region47: #{tpu_custom_call.1} parent=39 // pred_region
          %v272 = vld [vmem:[%s0] sm:$0xff]
          %v273 = vld [vmem:[%s0 + $0x8] sm:$0xff]
          %v274 = vld [vmem:[%s0 + $0x10] sm:$0xff]
          %v275 = vld [vmem:[%s0 + $0x18] sm:$0xff]
          %v276 = vld [vmem:[%s0 + $0x20] sm:$0xff]
          %v277 = vld [vmem:[%s0 + $0x28] sm:$0xff]
          %v278 = vld [vmem:[%s0 + $0x30] sm:$0xff]
          %v279 = vld [vmem:[%s0 + $0x38] sm:$0xff]
          %280 = vst [vmem:[#allocation3] sm:$0xff] %v272
          %281 = vst [vmem:[#allocation3 + $0x8] sm:$0xff] %v273
          %282 = vst [vmem:[#allocation3 + $0x10] sm:$0xff] %v274
          %283 = vst [vmem:[#allocation3 + $0x18] sm:$0xff] %v275
          %284 = vst [vmem:[#allocation3 + $0x20] sm:$0xff] %v276
          %285 = vst [vmem:[#allocation3 + $0x28] sm:$0xff] %v277
          %286 = vst [vmem:[#allocation3 + $0x30] sm:$0xff] %v278
          %287 = vst [vmem:[#allocation3 + $0x38] sm:$0xff] %v279
        $region48: #{tpu_custom_call.1} parent=39 // pred_fallthru
          _
        // Predicated region
        $region49: #{tpu_custom_call.1} parent=39 // pred_check
          %p288 = pneg %p267
        $region50: #{tpu_custom_call.1} parent=39 // pred_check_branch
          %290 = sbr.rel (%p288) target = $region52
        $region51: #{tpu_custom_call.1} parent=39 // pred_region
          %291 = vst [vmem:[#allocation2] sm:$0xff] 0.0
          %292 = vst [vmem:[#allocation2 + $0x8] sm:$0xff] 0.0
          %293 = vst [vmem:[#allocation2 + $0x10] sm:$0xff] 0.0
          %294 = vst [vmem:[#allocation2 + $0x18] sm:$0xff] 0.0
          %295 = vst [vmem:[#allocation2 + $0x20] sm:$0xff] 0.0
          %296 = vst [vmem:[#allocation2 + $0x28] sm:$0xff] 0.0
          %297 = vst [vmem:[#allocation2 + $0x30] sm:$0xff] 0.0
          %298 = vst [vmem:[#allocation2 + $0x38] sm:$0xff] 0.0
        $region52: #{tpu_custom_call.1} parent=39 // pred_fallthru
          _
        %v299 = vld [vmem:[#allocation3] sm:$0xff]
        %v300 = vld [vmem:[#allocation3 + $0x8] sm:$0xff]
        %v301 = vld [vmem:[#allocation3 + $0x10] sm:$0xff]
        %v302 = vld [vmem:[#allocation3 + $0x18] sm:$0xff]
        %v303 = vld [vmem:[#allocation3 + $0x20] sm:$0xff]
        %v304 = vld [vmem:[#allocation3 + $0x28] sm:$0xff]
        %v305 = vld [vmem:[#allocation3 + $0x30] sm:$0xff]
        %v306 = vld [vmem:[#allocation3 + $0x38] sm:$0xff]
        %v307 = vld [vmem:[%s235] sm:$0xff]
        %v308 = vld [vmem:[%s235 + $0x8] sm:$0xff]
        %v309 = vld [vmem:[%s235 + $0x10] sm:$0xff]
        %v310 = vld [vmem:[%s235 + $0x18] sm:$0xff]
        %v311 = vld [vmem:[%s235 + $0x20] sm:$0xff]
        %v312 = vld [vmem:[%s235 + $0x28] sm:$0xff]
        %v313 = vld [vmem:[%s235 + $0x30] sm:$0xff]
        %v314 = vld [vmem:[%s235 + $0x38] sm:$0xff]
        %v315 = vld [vmem:[%s235 + $0x40] sm:$0xff]
        %v316 = vld [vmem:[%s235 + $0x48] sm:$0xff]
        %v317 = vld [vmem:[%s235 + $0x50] sm:$0xff]
        %v318 = vld [vmem:[%s235 + $0x58] sm:$0xff]
        %v319 = vld [vmem:[%s235 + $0x60] sm:$0xff]
        %v320 = vld [vmem:[%s235 + $0x68] sm:$0xff]
        %v321 = vld [vmem:[%s235 + $0x70] sm:$0xff]
        %v322 = vld [vmem:[%s235 + $0x78] sm:$0xff]
        %v323 = vld [vmem:[%s235 + $0x80] sm:$0xff]
        %v324 = vld [vmem:[%s235 + $0x88] sm:$0xff]
        %v325 = vld [vmem:[%s235 + $0x90] sm:$0xff]
        %v326 = vld [vmem:[%s235 + $0x98] sm:$0xff]
        %v327 = vld [vmem:[%s235 + $0xa0] sm:$0xff]
        %v328 = vld [vmem:[%s235 + $0xa8] sm:$0xff]
        %v329 = vld [vmem:[%s235 + $0xb0] sm:$0xff]
        %v330 = vld [vmem:[%s235 + $0xb8] sm:$0xff]
        %v331 = vld [vmem:[%s235 + $0xc0] sm:$0xff]
        %v332 = vld [vmem:[%s235 + $0xc8] sm:$0xff]
        %v333 = vld [vmem:[%s235 + $0xd0] sm:$0xff]
        %v334 = vld [vmem:[%s235 + $0xd8] sm:$0xff]
        %v335 = vld [vmem:[%s235 + $0xe0] sm:$0xff]
        %v336 = vld [vmem:[%s235 + $0xe8] sm:$0xff]
        %v337 = vld [vmem:[%s235 + $0xf0] sm:$0xff]
        %v338 = vld [vmem:[%s235 + $0xf8] sm:$0xff]
        %v339 = vlaneseq
        %v340 = vshrl.u32 %v339, 7
        %v341 = vadd.s32 %v340, 8
        %v342 = vadd.s32 %v340, 16
        %v343 = vadd.s32 %v340, 24
        // Predicated region
        $region53: #{tpu_custom_call.1} parent=39 // pred_check
          %p344 = pneg %p267
        $region54: #{tpu_custom_call.1} parent=39 // pred_check_branch
          %346 = sbr.rel (%p344) target = $region56
        $region55: #{tpu_custom_call.1} parent=39 // pred_region
          %vm355 = vcmask 1040384
          %v356 = vrot.slane %v299, 7
          %v357 = vrot.slane %v300, 7
          %v358 = vrot.slane %v301, 7
          %v359 = vsel %vm355, %v356, %v358
          %v360 = vrot.slane %v302, 7
          %v361 = vsel %vm355, %v357, %v360
          %v362 = vrot.slane %v303, 7
          %v363 = vsel %vm355, %v358, %v362
          %v364 = vrot.slane %v304, 7
          %v365 = vsel %vm355, %v360, %v364
          %v366 = vrot.slane %v305, 7
          %v367 = vsel %vm355, %v362, %v366
          %v368 = vrot.slane %v306, 7
          %v369 = vsel %vm355, %v364, %v368
          %v378 = vsel %vm355, 0.0, %v356
          %v379 = vsel %vm355, 0.0, %v357
          %vm380 = vcmp.lt.s32.totalorder %v340, 0
          %v381 = vsub.s32 0, %v340
          %v382 = vsel %vm380, %v381, %v340
          %v383 = vshrl.u32 %v382, 4
          %v384 = vand.u32 %v382, 15
          %v385 = vsub.s32 0, %v384
          %v386 = vsel %vm380, %v385, %v384
          %vm387 = vcmp.lt.s32.totalorder %v341, 0
          %v388 = vsub.s32 0, %v341
          %v389 = vsel %vm387, %v388, %v341
          %v390 = vshrl.u32 %v389, 4
          %v391 = vand.u32 %v389, 15
          %v392 = vsub.s32 0, %v391
          %v393 = vsel %vm387, %v392, %v391
          %vm394 = vcmp.lt.s32.totalorder %v342, 0
          %v395 = vsub.s32 0, %v342
          %v396 = vsel %vm394, %v395, %v342
          %v397 = vshrl.u32 %v396, 4
          %v398 = vand.u32 %v396, 15
          %v399 = vsub.s32 0, %v398
          %v400 = vsel %vm394, %v399, %v398
          %vm401 = vcmp.lt.s32.totalorder %v343, 0
          %v402 = vsub.s32 0, %v343
          %v403 = vsel %vm401, %v402, %v343
          %v404 = vshrl.u32 %v403, 4
          %v405 = vand.u32 %v403, 15
          %v406 = vsub.s32 0, %v405
          %v407 = vsel %vm401, %v406, %v405
          %vm408 = vcmp.ne.s32.totalorder %v386, 0
          %vm409 = vcmp.ne.s32.totalorder %v393, 0
          %vm410 = vcmp.ne.s32.totalorder %v400, 0
          %vm411 = vcmp.ne.s32.totalorder %v407, 0
          %vm412 = vcmp.lt.s32.totalorder %v386, 0
          %vm413 = vcmp.lt.s32.totalorder %v393, 0
          %vm414 = vcmp.lt.s32.totalorder %v400, 0
          %vm415 = vcmp.lt.s32.totalorder %v407, 0
          %vm416 = vmand %vm412, %vm408
          %vm417 = vmand %vm413, %vm409
          %vm418 = vmand %vm414, %vm410
          %vm419 = vmand %vm415, %vm411
          %v420 = vadd.s32 %v386, 16
          %v421 = vadd.s32 %v393, 16
          %v422 = vadd.s32 %v400, 16
          %v423 = vadd.s32 %v407, 16
          %v424 = vsel %vm416, %v420, %v386
          %v425 = vsel %vm417, %v421, %v393
          %v426 = vsel %vm418, %v422, %v400
          %v427 = vsel %vm419, %v423, %v407
          %vm428 = vcmp.ne.s32.totalorder %v424, 0
          %vm429 = vcmp.ne.s32.totalorder %v425, 0
          %vm430 = vcmp.ne.s32.totalorder %v426, 0
          %vm431 = vcmp.ne.s32.totalorder %v427, 0
          %v432 = vsel %vm428, 1, 0
          %v433 = vsel %vm429, 1, 0
          %v434 = vsel %vm430, 1, 0
          %v435 = vsel %vm431, 1, 0
          %vm436 = vcmp.eq.s32.totalorder %v432, 1
          %vm437 = vcmp.eq.s32.totalorder %v433, 1
          %vm438 = vcmp.eq.s32.totalorder %v434, 1
          %vm439 = vcmp.eq.s32.totalorder %v435, 1
          %v440 = vsel %vm436, %v378, 0.0
          %v441 = vsel %vm436, %v379, 0.0
          %v442 = vsel %vm437, %v359, 0.0
          %v443 = vsel %vm437, %v361, 0.0
          %v444 = vsel %vm438, %v363, 0.0
          %v445 = vsel %vm438, %v365, 0.0
          %v446 = vsel %vm439, %v367, 0.0
          %v447 = vsel %vm439, %v369, 0.0
          %v448 = vld [vmem:[#allocation2] sm:$0xff]
          %v449 = vld [vmem:[#allocation2 + $0x8] sm:$0xff]
          %v450 = vld [vmem:[#allocation2 + $0x10] sm:$0xff]
          %v451 = vld [vmem:[#allocation2 + $0x18] sm:$0xff]
          %v452 = vld [vmem:[#allocation2 + $0x20] sm:$0xff]
          %v453 = vld [vmem:[#allocation2 + $0x28] sm:$0xff]
          %v454 = vld [vmem:[#allocation2 + $0x30] sm:$0xff]
          %v455 = vld [vmem:[#allocation2 + $0x38] sm:$0xff]
          %v456 = vpack.c.bf16 %v442, %v440
          %v457 = vpack.c.bf16 %v443, %v441
          %v458 = vpack.c.bf16 %v446, %v444
          %v459 = vpack.c.bf16 %v447, %v445
          %v492 = vunpack.c.l.b16 %v307
          %v493 = vunpack.c.h.b16 %v307
          %v494 = vunpack.c.l.b16 %v308
          %v495 = vunpack.c.h.b16 %v308
          %v496 = vunpack.c.l.b16 %v309
          %v497 = vunpack.c.h.b16 %v309
          %v498 = vunpack.c.l.b16 %v310
          %v499 = vunpack.c.h.b16 %v310
          %v500 = vunpack.c.l.b16 %v311
          %v501 = vunpack.c.h.b16 %v311
          %v502 = vunpack.c.l.b16 %v312
          %v503 = vunpack.c.h.b16 %v312
          %v504 = vunpack.c.l.b16 %v313
          %v505 = vunpack.c.h.b16 %v313
          %v506 = vunpack.c.l.b16 %v314
          %v507 = vunpack.c.h.b16 %v314
          %v508 = vunpack.c.l.b16 %v315
          %v509 = vunpack.c.h.b16 %v315
          %v510 = vunpack.c.l.b16 %v316
          %v511 = vunpack.c.h.b16 %v316
          %v512 = vunpack.c.l.b16 %v317
          %v513 = vunpack.c.h.b16 %v317
          %v514 = vunpack.c.l.b16 %v318
          %v515 = vunpack.c.h.b16 %v318
          %v516 = vunpack.c.l.b16 %v319
          %v517 = vunpack.c.h.b16 %v319
          %v518 = vunpack.c.l.b16 %v320
          %v519 = vunpack.c.h.b16 %v320
          %v520 = vunpack.c.l.b16 %v321
          %v521 = vunpack.c.h.b16 %v321
          %v522 = vunpack.c.l.b16 %v322
          %v523 = vunpack.c.h.b16 %v322
          %v524 = vunpack.c.l.b16 %v323
          %v525 = vunpack.c.h.b16 %v323
          %v526 = vunpack.c.l.b16 %v324
          %v527 = vunpack.c.h.b16 %v324
          %v528 = vunpack.c.l.b16 %v325
          %v529 = vunpack.c.h.b16 %v325
          %v530 = vunpack.c.l.b16 %v326
          %v531 = vunpack.c.h.b16 %v326
          %v532 = vunpack.c.l.b16 %v327
          %v533 = vunpack.c.h.b16 %v327
          %v534 = vunpack.c.l.b16 %v328
          %v535 = vunpack.c.h.b16 %v328
          %v536 = vunpack.c.l.b16 %v329
          %v537 = vunpack.c.h.b16 %v329
          %v538 = vunpack.c.l.b16 %v330
          %v539 = vunpack.c.h.b16 %v330
          %v540 = vunpack.c.l.b16 %v331
          %v541 = vunpack.c.h.b16 %v331
          %v542 = vunpack.c.l.b16 %v332
          %v543 = vunpack.c.h.b16 %v332
          %v544 = vunpack.c.l.b16 %v333
          %v545 = vunpack.c.h.b16 %v333
          %v546 = vunpack.c.l.b16 %v334
          %v547 = vunpack.c.h.b16 %v334
          %v548 = vunpack.c.l.b16 %v335
          %v549 = vunpack.c.h.b16 %v335
          %v550 = vunpack.c.l.b16 %v336
          %v551 = vunpack.c.h.b16 %v336
          %v552 = vunpack.c.l.b16 %v337
          %v553 = vunpack.c.h.b16 %v337
          %v554 = vunpack.c.l.b16 %v338
          %v555 = vunpack.c.h.b16 %v338
          %v556 = vpack.c.b16 %v494, %v492
          %v557 = vpack.c.b16 %v495, %v493
          %v558 = vpack.c.b16 %v498, %v496
          %v559 = vpack.c.b16 %v499, %v497
          %v560 = vpack.c.b16 %v502, %v500
          %v561 = vpack.c.b16 %v503, %v501
          %v562 = vpack.c.b16 %v506, %v504
          %v563 = vpack.c.b16 %v507, %v505
          %v564 = vpack.c.b16 %v510, %v508
          %v565 = vpack.c.b16 %v511, %v509
          %v566 = vpack.c.b16 %v514, %v512
          %v567 = vpack.c.b16 %v515, %v513
          %v568 = vpack.c.b16 %v518, %v516
          %v569 = vpack.c.b16 %v519, %v517
          %v570 = vpack.c.b16 %v522, %v520
          %v571 = vpack.c.b16 %v523, %v521
          %v572 = vpack.c.b16 %v526, %v524
          %v573 = vpack.c.b16 %v527, %v525
          %v574 = vpack.c.b16 %v530, %v528
          %v575 = vpack.c.b16 %v531, %v529
          %v576 = vpack.c.b16 %v534, %v532
          %v577 = vpack.c.b16 %v535, %v533
          %v578 = vpack.c.b16 %v538, %v536
          %v579 = vpack.c.b16 %v539, %v537
          %v580 = vpack.c.b16 %v542, %v540
          %v581 = vpack.c.b16 %v543, %v541
          %v582 = vpack.c.b16 %v546, %v544
          %v583 = vpack.c.b16 %v547, %v545
          %v584 = vpack.c.b16 %v550, %v548
          %v585 = vpack.c.b16 %v551, %v549
          %v586 = vpack.c.b16 %v554, %v552
          %v587 = vpack.c.b16 %v555, %v553
          %620 = vmatpush.bf16.msra.mxu0 %v570
          %621 = vmatpush.bf16.msra.mxu0 %v568
          %622 = vmatpush.bf16.msra.mxu0 %v566
          %623 = vmatpush.bf16.msra.mxu0 %v564
          %624 = vmatpush.bf16.msra.mxu0 %v562
          %625 = vmatpush.bf16.msra.mxu0 %v560
          %626 = vmatpush.bf16.msra.mxu0 %v558
          %627 = vmatpush.bf16.msra.mxu0 %v556
          %628 = vmatmul.bf16.gmra.mxu0 %v456
          %v629 = vpop.f32.mrf.mxu0
          %v630 = vadd.f32 0.0, %v629
          %v631 = vpop.f32.mrf.mxu0
          %v632 = vadd.f32 0.0, %v631
          %633 = vmatmul.bf16.gmra.mxu0 %v458
          %v634 = vpop.f32.mrf.mxu0
          %v635 = vadd.f32 0.0, %v634
          %v636 = vpop.f32.mrf.mxu0
          %v637 = vadd.f32 0.0, %v636
          %638 = vdwg.mxu0
          %639 = vmatpush.bf16.msra.mxu0 %v586
          %640 = vmatpush.bf16.msra.mxu0 %v584
          %641 = vmatpush.bf16.msra.mxu0 %v582
          %642 = vmatpush.bf16.msra.mxu0 %v580
          %643 = vmatpush.bf16.msra.mxu0 %v578
          %644 = vmatpush.bf16.msra.mxu0 %v576
          %645 = vmatpush.bf16.msra.mxu0 %v574
          %646 = vmatpush.bf16.msra.mxu0 %v572
          %647 = vmatmul.bf16.gmra.mxu0 %v457
          %v648 = vpop.f32.mrf.mxu0
          %v649 = vadd.f32 %v630, %v648
          %v650 = vpop.f32.mrf.mxu0
          %v651 = vadd.f32 %v632, %v650
          %652 = vmatmul.bf16.gmra.mxu0 %v459
          %v653 = vpop.f32.mrf.mxu0
          %v654 = vadd.f32 %v635, %v653
          %v655 = vpop.f32.mrf.mxu0
          %v656 = vadd.f32 %v637, %v655
          %657 = vdwg.mxu0
          %658 = vmatpush.bf16.msra.mxu0 %v571
          %659 = vmatpush.bf16.msra.mxu0 %v569
          %660 = vmatpush.bf16.msra.mxu0 %v567
          %661 = vmatpush.bf16.msra.mxu0 %v565
          %662 = vmatpush.bf16.msra.mxu0 %v563
          %663 = vmatpush.bf16.msra.mxu0 %v561
          %664 = vmatpush.bf16.msra.mxu0 %v559
          %665 = vmatpush.bf16.msra.mxu0 %v557
          %666 = vmatmul.bf16.gmra.mxu0 %v456
          %v667 = vpop.f32.mrf.mxu0
          %v668 = vadd.f32 0.0, %v667
          %v669 = vpop.f32.mrf.mxu0
          %v670 = vadd.f32 0.0, %v669
          %671 = vmatmul.bf16.gmra.mxu0 %v458
          %v672 = vpop.f32.mrf.mxu0
          %v673 = vadd.f32 0.0, %v672
          %v674 = vpop.f32.mrf.mxu0
          %v675 = vadd.f32 0.0, %v674
          %676 = vdwg.mxu0
          %677 = vmatpush.bf16.msra.mxu0 %v587
          %678 = vmatpush.bf16.msra.mxu0 %v585
          %679 = vmatpush.bf16.msra.mxu0 %v583
          %680 = vmatpush.bf16.msra.mxu0 %v581
          %681 = vmatpush.bf16.msra.mxu0 %v579
          %682 = vmatpush.bf16.msra.mxu0 %v577
          %683 = vmatpush.bf16.msra.mxu0 %v575
          %684 = vmatpush.bf16.msra.mxu0 %v573
          %685 = vmatmul.bf16.gmra.mxu0 %v457
          %v686 = vpop.f32.mrf.mxu0
          %v687 = vadd.f32 %v668, %v686
          %v688 = vpop.f32.mrf.mxu0
          %v689 = vadd.f32 %v670, %v688
          %690 = vmatmul.bf16.gmra.mxu0 %v459
          %v691 = vpop.f32.mrf.mxu0
          %v692 = vadd.f32 %v673, %v691
          %v693 = vpop.f32.mrf.mxu0
          %v694 = vadd.f32 %v675, %v693
          %695 = vdwg.mxu0
          %v696 = vadd.f32 %v448, %v649
          %v697 = vadd.f32 %v449, %v687
          %v698 = vadd.f32 %v450, %v651
          %v699 = vadd.f32 %v451, %v689
          %v700 = vadd.f32 %v452, %v654
          %v701 = vadd.f32 %v453, %v692
          %v702 = vadd.f32 %v454, %v656
          %v703 = vadd.f32 %v455, %v694
          %704 = vst [vmem:[#allocation2] sm:$0xff] %v696
          %705 = vst [vmem:[#allocation2 + $0x8] sm:$0xff] %v697
          %706 = vst [vmem:[#allocation2 + $0x10] sm:$0xff] %v698
          %707 = vst [vmem:[#allocation2 + $0x18] sm:$0xff] %v699
          %708 = vst [vmem:[#allocation2 + $0x20] sm:$0xff] %v700
          %709 = vst [vmem:[#allocation2 + $0x28] sm:$0xff] %v701
          %710 = vst [vmem:[#allocation2 + $0x30] sm:$0xff] %v702
          %711 = vst [vmem:[#allocation2 + $0x38] sm:$0xff] %v703
        $region56: #{tpu_custom_call.1} parent=39 // pred_fallthru
          _
        %p712 = scmp.eq.s32.totalorder %s25, 1
        // Predicated region
        $region57: #{tpu_custom_call.1} parent=39 // pred_check
          %p713 = pneg %p712
        $region58: #{tpu_custom_call.1} parent=39 // pred_check_branch
          %715 = sbr.rel (%p713) target = $region60
        $region59: #{tpu_custom_call.1} parent=39 // pred_region
          %v716 = vld [vmem:[#allocation2] sm:$0xff]
          %v717 = vld [vmem:[#allocation2 + $0x8] sm:$0xff]
          %v718 = vld [vmem:[#allocation2 + $0x10] sm:$0xff]
          %v719 = vld [vmem:[#allocation2 + $0x18] sm:$0xff]
          %v720 = vld [vmem:[#allocation2 + $0x20] sm:$0xff]
          %v721 = vld [vmem:[#allocation2 + $0x28] sm:$0xff]
          %v722 = vld [vmem:[#allocation2 + $0x30] sm:$0xff]
          %v723 = vld [vmem:[#allocation2 + $0x38] sm:$0xff]
          %v724 = vpack.c.bf16 %v301, %v299
          %v725 = vpack.c.bf16 %v302, %v300
          %v726 = vpack.c.bf16 %v305, %v303
          %v727 = vpack.c.bf16 %v306, %v304
          %v760 = vunpack.c.l.b16 %v307
          %v761 = vunpack.c.h.b16 %v307
          %v762 = vunpack.c.l.b16 %v308
          %v763 = vunpack.c.h.b16 %v308
          %v764 = vunpack.c.l.b16 %v309
          %v765 = vunpack.c.h.b16 %v309
          %v766 = vunpack.c.l.b16 %v310
          %v767 = vunpack.c.h.b16 %v310
          %v768 = vunpack.c.l.b16 %v311
          %v769 = vunpack.c.h.b16 %v311
          %v770 = vunpack.c.l.b16 %v312
          %v771 = vunpack.c.h.b16 %v312
          %v772 = vunpack.c.l.b16 %v313
          %v773 = vunpack.c.h.b16 %v313
          %v774 = vunpack.c.l.b16 %v314
          %v775 = vunpack.c.h.b16 %v314
          %v776 = vunpack.c.l.b16 %v315
          %v777 = vunpack.c.h.b16 %v315
          %v778 = vunpack.c.l.b16 %v316
          %v779 = vunpack.c.h.b16 %v316
          %v780 = vunpack.c.l.b16 %v317
          %v781 = vunpack.c.h.b16 %v317
          %v782 = vunpack.c.l.b16 %v318
          %v783 = vunpack.c.h.b16 %v318
          %v784 = vunpack.c.l.b16 %v319
          %v785 = vunpack.c.h.b16 %v319
          %v786 = vunpack.c.l.b16 %v320
          %v787 = vunpack.c.h.b16 %v320
          %v788 = vunpack.c.l.b16 %v321
          %v789 = vunpack.c.h.b16 %v321
          %v790 = vunpack.c.l.b16 %v322
          %v791 = vunpack.c.h.b16 %v322
          %v792 = vunpack.c.l.b16 %v323
          %v793 = vunpack.c.h.b16 %v323
          %v794 = vunpack.c.l.b16 %v324
          %v795 = vunpack.c.h.b16 %v324
          %v796 = vunpack.c.l.b16 %v325
          %v797 = vunpack.c.h.b16 %v325
          %v798 = vunpack.c.l.b16 %v326
          %v799 = vunpack.c.h.b16 %v326
          %v800 = vunpack.c.l.b16 %v327
          %v801 = vunpack.c.h.b16 %v327
          %v802 = vunpack.c.l.b16 %v328
          %v803 = vunpack.c.h.b16 %v328
          %v804 = vunpack.c.l.b16 %v329
          %v805 = vunpack.c.h.b16 %v329
          %v806 = vunpack.c.l.b16 %v330
          %v807 = vunpack.c.h.b16 %v330
          %v808 = vunpack.c.l.b16 %v331
          %v809 = vunpack.c.h.b16 %v331
          %v810 = vunpack.c.l.b16 %v332
          %v811 = vunpack.c.h.b16 %v332
          %v812 = vunpack.c.l.b16 %v333
          %v813 = vunpack.c.h.b16 %v333
          %v814 = vunpack.c.l.b16 %v334
          %v815 = vunpack.c.h.b16 %v334
          %v816 = vunpack.c.l.b16 %v335
          %v817 = vunpack.c.h.b16 %v335
          %v818 = vunpack.c.l.b16 %v336
          %v819 = vunpack.c.h.b16 %v336
          %v820 = vunpack.c.l.b16 %v337
          %v821 = vunpack.c.h.b16 %v337
          %v822 = vunpack.c.l.b16 %v338
          %v823 = vunpack.c.h.b16 %v338
          %v824 = vpack.c.b16 %v762, %v760
          %v825 = vpack.c.b16 %v763, %v761
          %v826 = vpack.c.b16 %v766, %v764
          %v827 = vpack.c.b16 %v767, %v765
          %v828 = vpack.c.b16 %v770, %v768
          %v829 = vpack.c.b16 %v771, %v769
          %v830 = vpack.c.b16 %v774, %v772
          %v831 = vpack.c.b16 %v775, %v773
          %v832 = vpack.c.b16 %v778, %v776
          %v833 = vpack.c.b16 %v779, %v777
          %v834 = vpack.c.b16 %v782, %v780
          %v835 = vpack.c.b16 %v783, %v781
          %v836 = vpack.c.b16 %v786, %v784
          %v837 = vpack.c.b16 %v787, %v785
          %v838 = vpack.c.b16 %v790, %v788
          %v839 = vpack.c.b16 %v791, %v789
          %v840 = vpack.c.b16 %v794, %v792
          %v841 = vpack.c.b16 %v795, %v793
          %v842 = vpack.c.b16 %v798, %v796
          %v843 = vpack.c.b16 %v799, %v797
          %v844 = vpack.c.b16 %v802, %v800
          %v845 = vpack.c.b16 %v803, %v801
          %v846 = vpack.c.b16 %v806, %v804
          %v847 = vpack.c.b16 %v807, %v805
          %v848 = vpack.c.b16 %v810, %v808
          %v849 = vpack.c.b16 %v811, %v809
          %v850 = vpack.c.b16 %v814, %v812
          %v851 = vpack.c.b16 %v815, %v813
          %v852 = vpack.c.b16 %v818, %v816
          %v853 = vpack.c.b16 %v819, %v817
          %v854 = vpack.c.b16 %v822, %v820
          %v855 = vpack.c.b16 %v823, %v821
          %888 = vmatpush.bf16.msra.mxu0 %v838
          %889 = vmatpush.bf16.msra.mxu0 %v836
          %890 = vmatpush.bf16.msra.mxu0 %v834
          %891 = vmatpush.bf16.msra.mxu0 %v832
          %892 = vmatpush.bf16.msra.mxu0 %v830
          %893 = vmatpush.bf16.msra.mxu0 %v828
          %894 = vmatpush.bf16.msra.mxu0 %v826
          %895 = vmatpush.bf16.msra.mxu0 %v824
          %896 = vmatmul.bf16.gmra.mxu0 %v724
          %v897 = vpop.f32.mrf.mxu0
          %v898 = vadd.f32 0.0, %v897
          %v899 = vpop.f32.mrf.mxu0
          %v900 = vadd.f32 0.0, %v899
          %901 = vmatmul.bf16.gmra.mxu0 %v726
          %v902 = vpop.f32.mrf.mxu0
          %v903 = vadd.f32 0.0, %v902
          %v904 = vpop.f32.mrf.mxu0
          %v905 = vadd.f32 0.0, %v904
          %906 = vdwg.mxu0
          %907 = vmatpush.bf16.msra.mxu0 %v854
          %908 = vmatpush.bf16.msra.mxu0 %v852
          %909 = vmatpush.bf16.msra.mxu0 %v850
          %910 = vmatpush.bf16.msra.mxu0 %v848
          %911 = vmatpush.bf16.msra.mxu0 %v846
          %912 = vmatpush.bf16.msra.mxu0 %v844
          %913 = vmatpush.bf16.msra.mxu0 %v842
          %914 = vmatpush.bf16.msra.mxu0 %v840
          %915 = vmatmul.bf16.gmra.mxu0 %v725
          %v916 = vpop.f32.mrf.mxu0
          %v917 = vadd.f32 %v898, %v916
          %v918 = vpop.f32.mrf.mxu0
          %v919 = vadd.f32 %v900, %v918
          %920 = vmatmul.bf16.gmra.mxu0 %v727
          %v921 = vpop.f32.mrf.mxu0
          %v922 = vadd.f32 %v903, %v921
          %v923 = vpop.f32.mrf.mxu0
          %v924 = vadd.f32 %v905, %v923
          %925 = vdwg.mxu0
          %926 = vmatpush.bf16.msra.mxu0 %v839
          %927 = vmatpush.bf16.msra.mxu0 %v837
          %928 = vmatpush.bf16.msra.mxu0 %v835
          %929 = vmatpush.bf16.msra.mxu0 %v833
          %930 = vmatpush.bf16.msra.mxu0 %v831
          %931 = vmatpush.bf16.msra.mxu0 %v829
          %932 = vmatpush.bf16.msra.mxu0 %v827
          %933 = vmatpush.bf16.msra.mxu0 %v825
          %934 = vmatmul.bf16.gmra.mxu0 %v724
          %v935 = vpop.f32.mrf.mxu0
          %v936 = vadd.f32 0.0, %v935
          %v937 = vpop.f32.mrf.mxu0
          %v938 = vadd.f32 0.0, %v937
          %939 = vmatmul.bf16.gmra.mxu0 %v726
          %v940 = vpop.f32.mrf.mxu0
          %v941 = vadd.f32 0.0, %v940
          %v942 = vpop.f32.mrf.mxu0
          %v943 = vadd.f32 0.0, %v942
          %944 = vdwg.mxu0
          %945 = vmatpush.bf16.msra.mxu0 %v855
          %946 = vmatpush.bf16.msra.mxu0 %v853
          %947 = vmatpush.bf16.msra.mxu0 %v851
          %948 = vmatpush.bf16.msra.mxu0 %v849
          %949 = vmatpush.bf16.msra.mxu0 %v847
          %950 = vmatpush.bf16.msra.mxu0 %v845
          %951 = vmatpush.bf16.msra.mxu0 %v843
          %952 = vmatpush.bf16.msra.mxu0 %v841
          %953 = vmatmul.bf16.gmra.mxu0 %v725
          %v954 = vpop.f32.mrf.mxu0
          %v955 = vadd.f32 %v936, %v954
          %v956 = vpop.f32.mrf.mxu0
          %v957 = vadd.f32 %v938, %v956
          %958 = vmatmul.bf16.gmra.mxu0 %v727
          %v959 = vpop.f32.mrf.mxu0
          %v960 = vadd.f32 %v941, %v959
          %v961 = vpop.f32.mrf.mxu0
          %v962 = vadd.f32 %v943, %v961
          %963 = vdwg.mxu0
          %v964 = vadd.f32 %v716, %v917
          %v965 = vadd.f32 %v717, %v955
          %v966 = vadd.f32 %v718, %v919
          %v967 = vadd.f32 %v719, %v957
          %v968 = vadd.f32 %v720, %v922
          %v969 = vadd.f32 %v721, %v960
          %v970 = vadd.f32 %v722, %v924
          %v971 = vadd.f32 %v723, %v962
          %972 = vst [vmem:[#allocation2] sm:$0xff] %v964
          %973 = vst [vmem:[#allocation2 + $0x8] sm:$0xff] %v965
          %974 = vst [vmem:[#allocation2 + $0x10] sm:$0xff] %v966
          %975 = vst [vmem:[#allocation2 + $0x18] sm:$0xff] %v967
          %976 = vst [vmem:[#allocation2 + $0x20] sm:$0xff] %v968
          %977 = vst [vmem:[#allocation2 + $0x28] sm:$0xff] %v969
          %978 = vst [vmem:[#allocation2 + $0x30] sm:$0xff] %v970
          %979 = vst [vmem:[#allocation2 + $0x38] sm:$0xff] %v971
        $region60: #{tpu_custom_call.1} parent=39 // pred_fallthru
          _
        %p980 = scmp.eq.s32.totalorder %s25, 2
        // Predicated region
        $region61: #{tpu_custom_call.1} parent=39 // pred_check
          %p981 = pneg %p980
        $region62: #{tpu_custom_call.1} parent=39 // pred_check_branch
          %983 = sbr.rel (%p981) target = $region64
        $region63: #{tpu_custom_call.1} parent=39 // pred_region
          %vm992 = vcmask 1046528
          %v993 = vrot.slane %v299, 1
          %v994 = vrot.slane %v301, 1
          %v995 = vsel %vm992, %v993, %v994
          %v996 = vrot.slane %v300, 1
          %v997 = vrot.slane %v302, 1
          %v998 = vsel %vm992, %v996, %v997
          %v999 = vrot.slane %v303, 1
          %v1000 = vsel %vm992, %v994, %v999
          %v1001 = vrot.slane %v304, 1
          %v1002 = vsel %vm992, %v997, %v1001
          %v1003 = vrot.slane %v305, 1
          %v1004 = vsel %vm992, %v999, %v1003
          %v1005 = vrot.slane %v306, 1
          %v1006 = vsel %vm992, %v1001, %v1005
          %v1015 = vsel %vm992, %v1003, 0.0
          %v1016 = vsel %vm992, %v1005, 0.0
          %vm1017 = vcmp.lt.s32.totalorder %v340, 0
          %v1018 = vsub.s32 0, %v340
          %v1019 = vsel %vm1017, %v1018, %v340
          %v1020 = vshrl.u32 %v1019, 4
          %v1021 = vand.u32 %v1019, 15
          %v1022 = vsub.s32 0, %v1021
          %v1023 = vsel %vm1017, %v1022, %v1021
          %vm1024 = vcmp.lt.s32.totalorder %v341, 0
          %v1025 = vsub.s32 0, %v341
          %v1026 = vsel %vm1024, %v1025, %v341
          %v1027 = vshrl.u32 %v1026, 4
          %v1028 = vand.u32 %v1026, 15
          %v1029 = vsub.s32 0, %v1028
          %v1030 = vsel %vm1024, %v1029, %v1028
          %vm1031 = vcmp.lt.s32.totalorder %v342, 0
          %v1032 = vsub.s32 0, %v342
          %v1033 = vsel %vm1031, %v1032, %v342
          %v1034 = vshrl.u32 %v1033, 4
          %v1035 = vand.u32 %v1033, 15
          %v1036 = vsub.s32 0, %v1035
          %v1037 = vsel %vm1031, %v1036, %v1035
          %vm1038 = vcmp.lt.s32.totalorder %v343, 0
          %v1039 = vsub.s32 0, %v343
          %v1040 = vsel %vm1038, %v1039, %v343
          %v1041 = vshrl.u32 %v1040, 4
          %v1042 = vand.u32 %v1040, 15
          %v1043 = vsub.s32 0, %v1042
          %v1044 = vsel %vm1038, %v1043, %v1042
          %vm1045 = vcmp.ne.s32.totalorder %v1023, 0
          %vm1046 = vcmp.ne.s32.totalorder %v1030, 0
          %vm1047 = vcmp.ne.s32.totalorder %v1037, 0
          %vm1048 = vcmp.ne.s32.totalorder %v1044, 0
          %vm1049 = vcmp.lt.s32.totalorder %v1023, 0
          %vm1050 = vcmp.lt.s32.totalorder %v1030, 0
          %vm1051 = vcmp.lt.s32.totalorder %v1037, 0
          %vm1052 = vcmp.lt.s32.totalorder %v1044, 0
          %vm1053 = vmand %vm1049, %vm1045
          %vm1054 = vmand %vm1050, %vm1046
          %vm1055 = vmand %vm1051, %vm1047
          %vm1056 = vmand %vm1052, %vm1048
          %v1057 = vadd.s32 %v1023, 16
          %v1058 = vadd.s32 %v1030, 16
          %v1059 = vadd.s32 %v1037, 16
          %v1060 = vadd.s32 %v1044, 16
          %v1061 = vsel %vm1053, %v1057, %v1023
          %v1062 = vsel %vm1054, %v1058, %v1030
          %v1063 = vsel %vm1055, %v1059, %v1037
          %v1064 = vsel %vm1056, %v1060, %v1044
          %vm1065 = vcmp.ne.s32.totalorder %v1061, 15
          %vm1066 = vcmp.ne.s32.totalorder %v1062, 15
          %vm1067 = vcmp.ne.s32.totalorder %v1063, 15
          %vm1068 = vcmp.ne.s32.totalorder %v1064, 15
          %v1069 = vsel %vm1065, 1, 0
          %v1070 = vsel %vm1066, 1, 0
          %v1071 = vsel %vm1067, 1, 0
          %v1072 = vsel %vm1068, 1, 0
          %vm1073 = vcmp.eq.s32.totalorder %v1069, 1
          %vm1074 = vcmp.eq.s32.totalorder %v1070, 1
          %vm1075 = vcmp.eq.s32.totalorder %v1071, 1
          %vm1076 = vcmp.eq.s32.totalorder %v1072, 1
          %v1077 = vsel %vm1073, %v995, 0.0
          %v1078 = vsel %vm1073, %v998, 0.0
          %v1079 = vsel %vm1074, %v1000, 0.0
          %v1080 = vsel %vm1074, %v1002, 0.0
          %v1081 = vsel %vm1075, %v1004, 0.0
          %v1082 = vsel %vm1075, %v1006, 0.0
          %v1083 = vsel %vm1076, %v1015, 0.0
          %v1084 = vsel %vm1076, %v1016, 0.0
          %v1085 = vld [vmem:[#allocation2] sm:$0xff]
          %v1086 = vld [vmem:[#allocation2 + $0x8] sm:$0xff]
          %v1087 = vld [vmem:[#allocation2 + $0x10] sm:$0xff]
          %v1088 = vld [vmem:[#allocation2 + $0x18] sm:$0xff]
          %v1089 = vld [vmem:[#allocation2 + $0x20] sm:$0xff]
          %v1090 = vld [vmem:[#allocation2 + $0x28] sm:$0xff]
          %v1091 = vld [vmem:[#allocation2 + $0x30] sm:$0xff]
          %v1092 = vld [vmem:[#allocation2 + $0x38] sm:$0xff]
          %v1093 = vpack.c.bf16 %v1079, %v1077
          %v1094 = vpack.c.bf16 %v1080, %v1078
          %v1095 = vpack.c.bf16 %v1083, %v1081
          %v1096 = vpack.c.bf16 %v1084, %v1082
          %v1129 = vunpack.c.l.b16 %v307
          %v1130 = vunpack.c.h.b16 %v307
          %v1131 = vunpack.c.l.b16 %v308
          %v1132 = vunpack.c.h.b16 %v308
          %v1133 = vunpack.c.l.b16 %v309
          %v1134 = vunpack.c.h.b16 %v309
          %v1135 = vunpack.c.l.b16 %v310
          %v1136 = vunpack.c.h.b16 %v310
          %v1137 = vunpack.c.l.b16 %v311
          %v1138 = vunpack.c.h.b16 %v311
          %v1139 = vunpack.c.l.b16 %v312
          %v1140 = vunpack.c.h.b16 %v312
          %v1141 = vunpack.c.l.b16 %v313
          %v1142 = vunpack.c.h.b16 %v313
          %v1143 = vunpack.c.l.b16 %v314
          %v1144 = vunpack.c.h.b16 %v314
          %v1145 = vunpack.c.l.b16 %v315
          %v1146 = vunpack.c.h.b16 %v315
          %v1147 = vunpack.c.l.b16 %v316
          %v1148 = vunpack.c.h.b16 %v316
          %v1149 = vunpack.c.l.b16 %v317
          %v1150 = vunpack.c.h.b16 %v317
          %v1151 = vunpack.c.l.b16 %v318
          %v1152 = vunpack.c.h.b16 %v318
          %v1153 = vunpack.c.l.b16 %v319
          %v1154 = vunpack.c.h.b16 %v319
          %v1155 = vunpack.c.l.b16 %v320
          %v1156 = vunpack.c.h.b16 %v320
          %v1157 = vunpack.c.l.b16 %v321
          %v1158 = vunpack.c.h.b16 %v321
          %v1159 = vunpack.c.l.b16 %v322
          %v1160 = vunpack.c.h.b16 %v322
          %v1161 = vunpack.c.l.b16 %v323
          %v1162 = vunpack.c.h.b16 %v323
          %v1163 = vunpack.c.l.b16 %v324
          %v1164 = vunpack.c.h.b16 %v324
          %v1165 = vunpack.c.l.b16 %v325
          %v1166 = vunpack.c.h.b16 %v325
          %v1167 = vunpack.c.l.b16 %v326
          %v1168 = vunpack.c.h.b16 %v326
          %v1169 = vunpack.c.l.b16 %v327
          %v1170 = vunpack.c.h.b16 %v327
          %v1171 = vunpack.c.l.b16 %v328
          %v1172 = vunpack.c.h.b16 %v328
          %v1173 = vunpack.c.l.b16 %v329
          %v1174 = vunpack.c.h.b16 %v329
          %v1175 = vunpack.c.l.b16 %v330
          %v1176 = vunpack.c.h.b16 %v330
          %v1177 = vunpack.c.l.b16 %v331
          %v1178 = vunpack.c.h.b16 %v331
          %v1179 = vunpack.c.l.b16 %v332
          %v1180 = vunpack.c.h.b16 %v332
          %v1181 = vunpack.c.l.b16 %v333
          %v1182 = vunpack.c.h.b16 %v333
          %v1183 = vunpack.c.l.b16 %v334
          %v1184 = vunpack.c.h.b16 %v334
          %v1185 = vunpack.c.l.b16 %v335
          %v1186 = vunpack.c.h.b16 %v335
          %v1187 = vunpack.c.l.b16 %v336
          %v1188 = vunpack.c.h.b16 %v336
          %v1189 = vunpack.c.l.b16 %v337
          %v1190 = vunpack.c.h.b16 %v337
          %v1191 = vunpack.c.l.b16 %v338
          %v1192 = vunpack.c.h.b16 %v338
          %v1193 = vpack.c.b16 %v1131, %v1129
          %v1194 = vpack.c.b16 %v1132, %v1130
          %v1195 = vpack.c.b16 %v1135, %v1133
          %v1196 = vpack.c.b16 %v1136, %v1134
          %v1197 = vpack.c.b16 %v1139, %v1137
          %v1198 = vpack.c.b16 %v1140, %v1138
          %v1199 = vpack.c.b16 %v1143, %v1141
          %v1200 = vpack.c.b16 %v1144, %v1142
          %v1201 = vpack.c.b16 %v1147, %v1145
          %v1202 = vpack.c.b16 %v1148, %v1146
          %v1203 = vpack.c.b16 %v1151, %v1149
          %v1204 = vpack.c.b16 %v1152, %v1150
          %v1205 = vpack.c.b16 %v1155, %v1153
          %v1206 = vpack.c.b16 %v1156, %v1154
          %v1207 = vpack.c.b16 %v1159, %v1157
          %v1208 = vpack.c.b16 %v1160, %v1158
          %v1209 = vpack.c.b16 %v1163, %v1161
          %v1210 = vpack.c.b16 %v1164, %v1162
          %v1211 = vpack.c.b16 %v1167, %v1165
          %v1212 = vpack.c.b16 %v1168, %v1166
          %v1213 = vpack.c.b16 %v1171, %v1169
          %v1214 = vpack.c.b16 %v1172, %v1170
          %v1215 = vpack.c.b16 %v1175, %v1173
          %v1216 = vpack.c.b16 %v1176, %v1174
          %v1217 = vpack.c.b16 %v1179, %v1177
          %v1218 = vpack.c.b16 %v1180, %v1178
          %v1219 = vpack.c.b16 %v1183, %v1181
          %v1220 = vpack.c.b16 %v1184, %v1182
          %v1221 = vpack.c.b16 %v1187, %v1185
          %v1222 = vpack.c.b16 %v1188, %v1186
          %v1223 = vpack.c.b16 %v1191, %v1189
          %v1224 = vpack.c.b16 %v1192, %v1190
          %1257 = vmatpush.bf16.msra.mxu0 %v1207
          %1258 = vmatpush.bf16.msra.mxu0 %v1205
          %1259 = vmatpush.bf16.msra.mxu0 %v1203
          %1260 = vmatpush.bf16.msra.mxu0 %v1201
          %1261 = vmatpush.bf16.msra.mxu0 %v1199
          %1262 = vmatpush.bf16.msra.mxu0 %v1197
          %1263 = vmatpush.bf16.msra.mxu0 %v1195
          %1264 = vmatpush.bf16.msra.mxu0 %v1193
          %1265 = vmatmul.bf16.gmra.mxu0 %v1093
          %v1266 = vpop.f32.mrf.mxu0
          %v1267 = vadd.f32 0.0, %v1266
          %v1268 = vpop.f32.mrf.mxu0
          %v1269 = vadd.f32 0.0, %v1268
          %1270 = vmatmul.bf16.gmra.mxu0 %v1095
          %v1271 = vpop.f32.mrf.mxu0
          %v1272 = vadd.f32 0.0, %v1271
          %v1273 = vpop.f32.mrf.mxu0
          %v1274 = vadd.f32 0.0, %v1273
          %1275 = vdwg.mxu0
          %1276 = vmatpush.bf16.msra.mxu0 %v1223
          %1277 = vmatpush.bf16.msra.mxu0 %v1221
          %1278 = vmatpush.bf16.msra.mxu0 %v1219
          %1279 = vmatpush.bf16.msra.mxu0 %v1217
          %1280 = vmatpush.bf16.msra.mxu0 %v1215
          %1281 = vmatpush.bf16.msra.mxu0 %v1213
          %1282 = vmatpush.bf16.msra.mxu0 %v1211
          %1283 = vmatpush.bf16.msra.mxu0 %v1209
          %1284 = vmatmul.bf16.gmra.mxu0 %v1094
          %v1285 = vpop.f32.mrf.mxu0
          %v1286 = vadd.f32 %v1267, %v1285
          %v1287 = vpop.f32.mrf.mxu0
          %v1288 = vadd.f32 %v1269, %v1287
          %1289 = vmatmul.bf16.gmra.mxu0 %v1096
          %v1290 = vpop.f32.mrf.mxu0
          %v1291 = vadd.f32 %v1272, %v1290
          %v1292 = vpop.f32.mrf.mxu0
          %v1293 = vadd.f32 %v1274, %v1292
          %1294 = vdwg.mxu0
          %1295 = vmatpush.bf16.msra.mxu0 %v1208
          %1296 = vmatpush.bf16.msra.mxu0 %v1206
          %1297 = vmatpush.bf16.msra.mxu0 %v1204
          %1298 = vmatpush.bf16.msra.mxu0 %v1202
          %1299 = vmatpush.bf16.msra.mxu0 %v1200
          %1300 = vmatpush.bf16.msra.mxu0 %v1198
          %1301 = vmatpush.bf16.msra.mxu0 %v1196
          %1302 = vmatpush.bf16.msra.mxu0 %v1194
          %1303 = vmatmul.bf16.gmra.mxu0 %v1093
          %v1304 = vpop.f32.mrf.mxu0
          %v1305 = vadd.f32 0.0, %v1304
          %v1306 = vpop.f32.mrf.mxu0
          %v1307 = vadd.f32 0.0, %v1306
          %1308 = vmatmul.bf16.gmra.mxu0 %v1095
          %v1309 = vpop.f32.mrf.mxu0
          %v1310 = vadd.f32 0.0, %v1309
          %v1311 = vpop.f32.mrf.mxu0
          %v1312 = vadd.f32 0.0, %v1311
          %1313 = vdwg.mxu0
          %1314 = vmatpush.bf16.msra.mxu0 %v1224
          %1315 = vmatpush.bf16.msra.mxu0 %v1222
          %1316 = vmatpush.bf16.msra.mxu0 %v1220
          %1317 = vmatpush.bf16.msra.mxu0 %v1218
          %1318 = vmatpush.bf16.msra.mxu0 %v1216
          %1319 = vmatpush.bf16.msra.mxu0 %v1214
          %1320 = vmatpush.bf16.msra.mxu0 %v1212
          %1321 = vmatpush.bf16.msra.mxu0 %v1210
          %1322 = vmatmul.bf16.gmra.mxu0 %v1094
          %v1323 = vpop.f32.mrf.mxu0
          %v1324 = vadd.f32 %v1305, %v1323
          %v1325 = vpop.f32.mrf.mxu0
          %v1326 = vadd.f32 %v1307, %v1325
          %1327 = vmatmul.bf16.gmra.mxu0 %v1096
          %v1328 = vpop.f32.mrf.mxu0
          %v1329 = vadd.f32 %v1310, %v1328
          %v1330 = vpop.f32.mrf.mxu0
          %v1331 = vadd.f32 %v1312, %v1330
          %1332 = vdwg.mxu0
          %v1333 = vadd.f32 %v1085, %v1286
          %v1334 = vadd.f32 %v1086, %v1324
          %v1335 = vadd.f32 %v1087, %v1288
          %v1336 = vadd.f32 %v1088, %v1326
          %v1337 = vadd.f32 %v1089, %v1291
          %v1338 = vadd.f32 %v1090, %v1329
          %v1339 = vadd.f32 %v1091, %v1293
          %v1340 = vadd.f32 %v1092, %v1331
          %1341 = vst [vmem:[#allocation2] sm:$0xff] %v1333
          %1342 = vst [vmem:[#allocation2 + $0x8] sm:$0xff] %v1334
          %1343 = vst [vmem:[#allocation2 + $0x10] sm:$0xff] %v1335
          %1344 = vst [vmem:[#allocation2 + $0x18] sm:$0xff] %v1336
          %1345 = vst [vmem:[#allocation2 + $0x20] sm:$0xff] %v1337
          %1346 = vst [vmem:[#allocation2 + $0x28] sm:$0xff] %v1338
          %1347 = vst [vmem:[#allocation2 + $0x30] sm:$0xff] %v1339
          %1348 = vst [vmem:[#allocation2 + $0x38] sm:$0xff] %v1340
          %v1349 = vld [vmem:[#allocation2] sm:$0xff]
          %v1350 = vld [vmem:[#allocation2 + $0x8] sm:$0xff]
          %v1351 = vld [vmem:[#allocation2 + $0x10] sm:$0xff]
          %v1352 = vld [vmem:[#allocation2 + $0x18] sm:$0xff]
          %v1353 = vld [vmem:[#allocation2 + $0x20] sm:$0xff]
          %v1354 = vld [vmem:[#allocation2 + $0x28] sm:$0xff]
          %v1355 = vld [vmem:[#allocation2 + $0x30] sm:$0xff]
          %v1356 = vld [vmem:[#allocation2 + $0x38] sm:$0xff]
          %v1357 = vadd.f32 %v1349, %v1351
          %v1358 = vadd.f32 %v1357, %v1353
          %v1359 = vadd.f32 %v1358, %v1355
          %v1360 = vrot.slane %v1359, 4
          %v1361 = vadd.f32 %v1359, %v1360
          %v1362 = vrot.slane %v1361, 2
          %v1363 = vadd.f32 %v1361, %v1362
          %v1364 = vrot.slane %v1363, 1
          %v1365 = vadd.f32 %v1363, %v1364
          %v1366 = vadd.f32 %v1350, %v1352
          %v1367 = vadd.f32 %v1366, %v1354
          %v1368 = vadd.f32 %v1367, %v1356
          %v1369 = vrot.slane %v1368, 4
          %v1370 = vadd.f32 %v1368, %v1369
          %v1371 = vrot.slane %v1370, 2
          %v1372 = vadd.f32 %v1370, %v1371
          %v1373 = vrot.slane %v1372, 1
          %v1374 = vadd.f32 %v1372, %v1373
          %v1375 = vmul.f32 %v1349, %v1349
          %v1376 = vmul.f32 %v1350, %v1350
          %v1377 = vmul.f32 %v1351, %v1351
          %v1378 = vmul.f32 %v1352, %v1352
          %v1379 = vmul.f32 %v1353, %v1353
          %v1380 = vmul.f32 %v1354, %v1354
          %v1381 = vmul.f32 %v1355, %v1355
          %v1382 = vmul.f32 %v1356, %v1356
          %v1383 = vadd.f32 %v1375, %v1377
          %v1384 = vadd.f32 %v1383, %v1379
          %v1385 = vadd.f32 %v1384, %v1381
          %v1386 = vrot.slane %v1385, 4
          %v1387 = vadd.f32 %v1385, %v1386
          %v1388 = vrot.slane %v1387, 2
          %v1389 = vadd.f32 %v1387, %v1388
          %v1390 = vrot.slane %v1389, 1
          %v1391 = vadd.f32 %v1389, %v1390
          %v1392 = vadd.f32 %v1376, %v1378
          %v1393 = vadd.f32 %v1392, %v1380
          %v1394 = vadd.f32 %v1393, %v1382
          %v1395 = vrot.slane %v1394, 4
          %v1396 = vadd.f32 %v1394, %v1395
          %v1397 = vrot.slane %v1396, 2
          %v1398 = vadd.f32 %v1396, %v1397
          %v1399 = vrot.slane %v1398, 1
          %v1400 = vadd.f32 %v1398, %v1399
          %v1401 = vld [vmem:[%s4] sm:$0xff]
          %v1402 = vld [vmem:[%s4 + $0x8] sm:$0xff]
          %v1403 = vld [vmem:[%s4 + $0x10] sm:$0xff]
          %v1404 = vld [vmem:[%s4 + $0x18] sm:$0xff]
          %v1405 = vld [vmem:[%s4 + $0x20] sm:$0xff]
          %v1406 = vld [vmem:[%s4 + $0x28] sm:$0xff]
          %v1407 = vld [vmem:[%s4 + $0x30] sm:$0xff]
          %v1408 = vld [vmem:[%s4 + $0x38] sm:$0xff]
          %v1409 = vld [vmem:[%s4 + $0x40] sm:$0xff]
          %v1410 = vld [vmem:[%s4 + $0x48] sm:$0xff]
          %v1411 = vld [vmem:[%s4 + $0x50] sm:$0xff]
          %v1412 = vld [vmem:[%s4 + $0x58] sm:$0xff]
          %v1413 = vld [vmem:[%s4 + $0x60] sm:$0xff]
          %v1414 = vld [vmem:[%s4 + $0x68] sm:$0xff]
          %v1415 = vld [vmem:[%s4 + $0x70] sm:$0xff]
          %v1416 = vld [vmem:[%s4 + $0x78] sm:$0xff]
          %v1417 = vld [vmem:[%s4 + $0x80] sm:$0xff]
          %v1418 = vld [vmem:[%s4 + $0x88] sm:$0xff]
          %v1419 = vld [vmem:[%s4 + $0x90] sm:$0xff]
          %v1420 = vld [vmem:[%s4 + $0x98] sm:$0xff]
          %v1421 = vld [vmem:[%s4 + $0xa0] sm:$0xff]
          %v1422 = vld [vmem:[%s4 + $0xa8] sm:$0xff]
          %v1423 = vld [vmem:[%s4 + $0xb0] sm:$0xff]
          %v1424 = vld [vmem:[%s4 + $0xb8] sm:$0xff]
          %v1425 = vld [vmem:[%s4 + $0xc0] sm:$0xff]
          %v1426 = vld [vmem:[%s4 + $0xc8] sm:$0xff]
          %v1427 = vld [vmem:[%s4 + $0xd0] sm:$0xff]
          %v1428 = vld [vmem:[%s4 + $0xd8] sm:$0xff]
          %v1429 = vld [vmem:[%s4 + $0xe0] sm:$0xff]
          %v1430 = vld [vmem:[%s4 + $0xe8] sm:$0xff]
          %v1431 = vld [vmem:[%s4 + $0xf0] sm:$0xff]
          %v1432 = vld [vmem:[%s4 + $0xf8] sm:$0xff]
          %1433 = vmatpush.msra.mxu0 %v1416
          %1434 = vmatpush.msra.mxu0 %v1415
          %1435 = vmatpush.msra.mxu0 %v1414
          %1436 = vmatpush.msra.mxu0 %v1413
          %1437 = vmatpush.msra.mxu0 %v1412
          %1438 = vmatpush.msra.mxu0 %v1411
          %1439 = vmatpush.msra.mxu0 %v1410
          %1440 = vmatpush.msra.mxu0 %v1409
          %1441 = vmatpush.msra.mxu0 %v1408
          %1442 = vmatpush.msra.mxu0 %v1407
          %1443 = vmatpush.msra.mxu0 %v1406
          %1444 = vmatpush.msra.mxu0 %v1405
          %1445 = vmatpush.msra.mxu0 %v1404
          %1446 = vmatpush.msra.mxu0 %v1403
          %1447 = vmatpush.msra.mxu0 %v1402
          %1448 = vmatpush.msra.mxu0 %v1401
          %1449 = vmatmul.f32.gmra.mxu0 %v1365
          %v1450 = vpop.f32.mrf.mxu0
          %v1451 = vadd.f32 0.0, %v1450
          %1452 = vdwg.mxu0
          %1453 = vmatpush.msra.mxu0 %v1432
          %1454 = vmatpush.msra.mxu0 %v1431
          %1455 = vmatpush.msra.mxu0 %v1430
          %1456 = vmatpush.msra.mxu0 %v1429
          %1457 = vmatpush.msra.mxu0 %v1428
          %1458 = vmatpush.msra.mxu0 %v1427
          %1459 = vmatpush.msra.mxu0 %v1426
          %1460 = vmatpush.msra.mxu0 %v1425
          %1461 = vmatpush.msra.mxu0 %v1424
          %1462 = vmatpush.msra.mxu0 %v1423
          %1463 = vmatpush.msra.mxu0 %v1422
          %1464 = vmatpush.msra.mxu0 %v1421
          %1465 = vmatpush.msra.mxu0 %v1420
          %1466 = vmatpush.msra.mxu0 %v1419
          %1467 = vmatpush.msra.mxu0 %v1418
          %1468 = vmatpush.msra.mxu0 %v1417
          %1469 = vmatmul.f32.gmra.mxu0 %v1374
          %v1470 = vpop.f32.mrf.mxu0
          %v1471 = vadd.f32 %v1451, %v1470
          %1472 = vdwg.mxu0
          %1473 = vmatpush.msra.mxu0 %v1416
          %1474 = vmatpush.msra.mxu0 %v1415
          %1475 = vmatpush.msra.mxu0 %v1414
          %1476 = vmatpush.msra.mxu0 %v1413
          %1477 = vmatpush.msra.mxu0 %v1412
          %1478 = vmatpush.msra.mxu0 %v1411
          %1479 = vmatpush.msra.mxu0 %v1410
          %1480 = vmatpush.msra.mxu0 %v1409
          %1481 = vmatpush.msra.mxu0 %v1408
          %1482 = vmatpush.msra.mxu0 %v1407
          %1483 = vmatpush.msra.mxu0 %v1406
          %1484 = vmatpush.msra.mxu0 %v1405
          %1485 = vmatpush.msra.mxu0 %v1404
          %1486 = vmatpush.msra.mxu0 %v1403
          %1487 = vmatpush.msra.mxu0 %v1402
          %1488 = vmatpush.msra.mxu0 %v1401
          %1489 = vmatmul.f32.gmra.mxu0 %v1391
          %v1490 = vpop.f32.mrf.mxu0
          %v1491 = vadd.f32 0.0, %v1490
          %1492 = vdwg.mxu0
          %1493 = vmatpush.msra.mxu0 %v1432
          %1494 = vmatpush.msra.mxu0 %v1431
          %1495 = vmatpush.msra.mxu0 %v1430
          %1496 = vmatpush.msra.mxu0 %v1429
          %1497 = vmatpush.msra.mxu0 %v1428
          %1498 = vmatpush.msra.mxu0 %v1427
          %1499 = vmatpush.msra.mxu0 %v1426
          %1500 = vmatpush.msra.mxu0 %v1425
          %1501 = vmatpush.msra.mxu0 %v1424
          %1502 = vmatpush.msra.mxu0 %v1423
          %1503 = vmatpush.msra.mxu0 %v1422
          %1504 = vmatpush.msra.mxu0 %v1421
          %1505 = vmatpush.msra.mxu0 %v1420
          %1506 = vmatpush.msra.mxu0 %v1419
          %1507 = vmatpush.msra.mxu0 %v1418
          %1508 = vmatpush.msra.mxu0 %v1417
          %1509 = vmatmul.f32.gmra.mxu0 %v1400
          %v1510 = vpop.f32.mrf.mxu0
          %v1511 = vadd.f32 %v1491, %v1510
          %1512 = vdwg.mxu0
          %v1513 = vmul.f32 %v1471, 0.001953125
          %v1514 = vmul.f32 %v1511, 0.001953125
          %v1515 = vmul.f32 %v1513, %v1513
          %v1516 = vsub.f32 %v1514, %v1515
          %v1517 = vld [vmem:[%s265] sm:$0x1]
          %v1518 = vld [vmem:[%s265 + $0x1] sm:$0x1]
          %v1519 = vadd.f32 %v1516, 1e-05
          %v1520 = vrsqrt.pop %v1519
          %v1521 = vmul.f32 %v1520, %v1519
          %v1522 = vmul.f32 %v1521, %v1520
          %v1523 = vmul.f32 0.5, %v1522
          %v1524 = vsub.f32 1.5, %v1523
          %v1525 = vmul.f32 %v1520, %v1524
          %vm1526 = vweird.f32 %v1519
          %vm1527 = vweird.f32 %v1520
          %vm1528 = vmor %vm1526, %vm1527
          %v1529 = vsel %vm1528, %v1520, %v1525
          %v1530 = vmul.f32 %v1517, %v1529
          %v1531 = vmul.f32 %v1513, %v1530
          %v1532 = vsub.f32 %v1518, %v1531
          %v1533 = vld [vmem:[%s3] sm:$0xff]
          %v1534 = vld [vmem:[%s3 + $0x8] sm:$0xff]
          %v1535 = vld [vmem:[%s3 + $0x10] sm:$0xff]
          %v1536 = vld [vmem:[%s3 + $0x18] sm:$0xff]
          %vm1537 = vcmask 130048
          %v1539 = vsel %vm1537, %v1530, 0
          %1541 = vmatpush.msra.mxu0 0.0
          %1542 = vmatpush.msra.mxu0 0.0
          %1543 = vmatpush.msra.mxu0 0.0
          %1544 = vmatpush.msra.mxu0 0.0
          %1545 = vmatpush.msra.mxu0 0.0
          %1546 = vmatpush.msra.mxu0 0.0
          %1547 = vmatpush.msra.mxu0 0.0
          %1548 = vmatpush.msra.mxu0 0.0
          %1549 = vmatpush.msra.mxu0 0.0
          %1550 = vmatpush.msra.mxu0 0.0
          %1551 = vmatpush.msra.mxu0 0.0
          %1552 = vmatpush.msra.mxu0 0.0
          %1553 = vmatpush.msra.mxu0 0.0
          %1554 = vmatpush.msra.mxu0 0.0
          %1555 = vmatpush.msra.mxu0 %v1535
          %1556 = vmatpush.msra.mxu0 %v1533
          %1557 = vmatmul.f32.gmra.mxu0 %v1539
          %v1558 = vpop.f32.mrf.mxu0
          %v1559 = vadd.f32 0.0, %v1558
          %1560 = vdwg.mxu0
          %1561 = vmatpush.msra.mxu0 0.0
          %1562 = vmatpush.msra.mxu0 0.0
          %1563 = vmatpush.msra.mxu0 0.0
          %1564 = vmatpush.msra.mxu0 0.0
          %1565 = vmatpush.msra.mxu0 0.0
          %1566 = vmatpush.msra.mxu0 0.0
          %1567 = vmatpush.msra.mxu0 0.0
          %1568 = vmatpush.msra.mxu0 0.0
          %1569 = vmatpush.msra.mxu0 0.0
          %1570 = vmatpush.msra.mxu0 0.0
          %1571 = vmatpush.msra.mxu0 0.0
          %1572 = vmatpush.msra.mxu0 0.0
          %1573 = vmatpush.msra.mxu0 0.0
          %1574 = vmatpush.msra.mxu0 0.0
          %1575 = vmatpush.msra.mxu0 %v1536
          %1576 = vmatpush.msra.mxu0 %v1534
          %1577 = vmatmul.f32.gmra.mxu0 %v1539
          %v1578 = vpop.f32.mrf.mxu0
          %v1579 = vadd.f32 0.0, %v1578
          %1580 = vdwg.mxu0
          %v1582 = vsel %vm1537, %v1532, 0
          %1584 = vmatpush.msra.mxu0 0.0
          %1585 = vmatpush.msra.mxu0 0.0
          %1586 = vmatpush.msra.mxu0 0.0
          %1587 = vmatpush.msra.mxu0 0.0
          %1588 = vmatpush.msra.mxu0 0.0
          %1589 = vmatpush.msra.mxu0 0.0
          %1590 = vmatpush.msra.mxu0 0.0
          %1591 = vmatpush.msra.mxu0 0.0
          %1592 = vmatpush.msra.mxu0 0.0
          %1593 = vmatpush.msra.mxu0 0.0
          %1594 = vmatpush.msra.mxu0 0.0
          %1595 = vmatpush.msra.mxu0 0.0
          %1596 = vmatpush.msra.mxu0 0.0
          %1597 = vmatpush.msra.mxu0 0.0
          %1598 = vmatpush.msra.mxu0 %v1535
          %1599 = vmatpush.msra.mxu0 %v1533
          %1600 = vmatmul.f32.gmra.mxu0 %v1582
          %v1601 = vpop.f32.mrf.mxu0
          %v1602 = vadd.f32 0.0, %v1601
          %1603 = vdwg.mxu0
          %1604 = vmatpush.msra.mxu0 0.0
          %1605 = vmatpush.msra.mxu0 0.0
          %1606 = vmatpush.msra.mxu0 0.0
          %1607 = vmatpush.msra.mxu0 0.0
          %1608 = vmatpush.msra.mxu0 0.0
          %1609 = vmatpush.msra.mxu0 0.0
          %1610 = vmatpush.msra.mxu0 0.0
          %1611 = vmatpush.msra.mxu0 0.0
          %1612 = vmatpush.msra.mxu0 0.0
          %1613 = vmatpush.msra.mxu0 0.0
          %1614 = vmatpush.msra.mxu0 0.0
          %1615 = vmatpush.msra.mxu0 0.0
          %1616 = vmatpush.msra.mxu0 0.0
          %1617 = vmatpush.msra.mxu0 0.0
          %1618 = vmatpush.msra.mxu0 %v1536
          %1619 = vmatpush.msra.mxu0 %v1534
          %1620 = vmatmul.f32.gmra.mxu0 %v1582
          %v1621 = vpop.f32.mrf.mxu0
          %v1622 = vadd.f32 0.0, %v1621
          %1623 = vdwg.mxu0
          %v1624 = vperm.slane %v1559, 0
          %v1625 = vperm.slane %v1579, 0
          %v1626 = vmul.f32 %v1349, %v1624
          %v1627 = vmul.f32 %v1350, %v1625
          %v1628 = vmul.f32 %v1351, %v1624
          %v1629 = vmul.f32 %v1352, %v1625
          %v1630 = vmul.f32 %v1353, %v1624
          %v1631 = vmul.f32 %v1354, %v1625
          %v1632 = vmul.f32 %v1355, %v1624
          %v1633 = vmul.f32 %v1356, %v1625
          %v1634 = vperm.slane %v1602, 0
          %v1635 = vperm.slane %v1622, 0
          %v1636 = vadd.f32 %v1626, %v1634
          %v1637 = vadd.f32 %v1627, %v1635
          %v1638 = vadd.f32 %v1628, %v1634
          %v1639 = vadd.f32 %v1629, %v1635
          %v1640 = vadd.f32 %v1630, %v1634
          %v1641 = vadd.f32 %v1631, %v1635
          %v1642 = vadd.f32 %v1632, %v1634
          %v1643 = vadd.f32 %v1633, %v1635
          // Predicated region
          $region65: #{tpu_custom_call.1} parent=63 // pred_check
            %p1644 = pneg %p266
          $region66: #{tpu_custom_call.1} parent=63 // pred_check_branch
            %1646 = sbr.rel (%p1644) target = $region68
          $region67: #{tpu_custom_call.1} parent=63 // pred_region
            %vm1647 = vcmp.gt.f32.partialorder %v1636, 0.0
            %vm1648 = vcmp.gt.f32.partialorder %v1637, 0.0
            %vm1649 = vcmp.gt.f32.partialorder %v1638, 0.0
            %vm1650 = vcmp.gt.f32.partialorder %v1639, 0.0
            %vm1651 = vcmp.gt.f32.partialorder %v1640, 0.0
            %vm1652 = vcmp.gt.f32.partialorder %v1641, 0.0
            %vm1653 = vcmp.gt.f32.partialorder %v1642, 0.0
            %vm1654 = vcmp.gt.f32.partialorder %v1643, 0.0
            %v1655 = vmul.f32 %v1636, 1.442695
            %v1656 = vpow.pop %v1655
            %v1657 = vmul.f32 %v1637, 1.442695
            %v1658 = vpow.pop %v1657
            %v1659 = vmul.f32 %v1638, 1.442695
            %v1660 = vpow.pop %v1659
            %v1661 = vmul.f32 %v1639, 1.442695
            %v1662 = vpow.pop %v1661
            %v1663 = vmul.f32 %v1640, 1.442695
            %v1664 = vpow.pop %v1663
            %v1665 = vmul.f32 %v1641, 1.442695
            %v1666 = vpow.pop %v1665
            %v1667 = vmul.f32 %v1642, 1.442695
            %v1668 = vpow.pop %v1667
            %v1669 = vmul.f32 %v1643, 1.442695
            %v1670 = vpow.pop %v1669
            %v1671 = vsub.f32 %v1656, 1.0
            %v1672 = vsub.f32 %v1658, 1.0
            %v1673 = vsub.f32 %v1660, 1.0
            %v1674 = vsub.f32 %v1662, 1.0
            %v1675 = vsub.f32 %v1664, 1.0
            %v1676 = vsub.f32 %v1666, 1.0
            %v1677 = vsub.f32 %v1668, 1.0
            %v1678 = vsub.f32 %v1670, 1.0
            %v1679 = vmul.f32 %v1671, 1.1111112
            %v1680 = vmul.f32 %v1672, 1.1111112
            %v1681 = vmul.f32 %v1673, 1.1111112
            %v1682 = vmul.f32 %v1674, 1.1111112
            %v1683 = vmul.f32 %v1675, 1.1111112
            %v1684 = vmul.f32 %v1676, 1.1111112
            %v1685 = vmul.f32 %v1677, 1.1111112
            %v1686 = vmul.f32 %v1678, 1.1111112
            %v1687 = vsel %vm1647, %v1636, %v1679
            %v1688 = vsel %vm1648, %v1637, %v1680
            %v1689 = vsel %vm1649, %v1638, %v1681
            %v1690 = vsel %vm1650, %v1639, %v1682
            %v1691 = vsel %vm1651, %v1640, %v1683
            %v1692 = vsel %vm1652, %v1641, %v1684
            %v1693 = vsel %vm1653, %v1642, %v1685
            %v1694 = vsel %vm1654, %v1643, %v1686
            %1695 = vst [vmem:[#allocation3] sm:$0xff] %v1687
            %1696 = vst [vmem:[#allocation3 + $0x8] sm:$0xff] %v1688
            %1697 = vst [vmem:[#allocation3 + $0x10] sm:$0xff] %v1689
            %1698 = vst [vmem:[#allocation3 + $0x18] sm:$0xff] %v1690
            %1699 = vst [vmem:[#allocation3 + $0x20] sm:$0xff] %v1691
            %1700 = vst [vmem:[#allocation3 + $0x28] sm:$0xff] %v1692
            %1701 = vst [vmem:[#allocation3 + $0x30] sm:$0xff] %v1693
            %1702 = vst [vmem:[#allocation3 + $0x38] sm:$0xff] %v1694
          $region68: #{tpu_custom_call.1} parent=63 // pred_fallthru
            _
          %p1703 = scmp.eq.s32.totalorder %s24, 1
          // Predicated region
          $region69: #{tpu_custom_call.1} parent=63 // pred_check
            %p1704 = pneg %p1703
          $region70: #{tpu_custom_call.1} parent=63 // pred_check_branch
            %1706 = sbr.rel (%p1704) target = $region72
          $region71: #{tpu_custom_call.1} parent=63 // pred_region
            %v1707 = vld [vmem:[%s0] sm:$0xff]
            %v1708 = vld [vmem:[%s0 + $0x8] sm:$0xff]
            %v1709 = vld [vmem:[%s0 + $0x10] sm:$0xff]
            %v1710 = vld [vmem:[%s0 + $0x18] sm:$0xff]
            %v1711 = vld [vmem:[%s0 + $0x20] sm:$0xff]
            %v1712 = vld [vmem:[%s0 + $0x28] sm:$0xff]
            %v1713 = vld [vmem:[%s0 + $0x30] sm:$0xff]
            %v1714 = vld [vmem:[%s0 + $0x38] sm:$0xff]
            %v1715 = vadd.f32 %v1636, %v1707
            %v1716 = vadd.f32 %v1637, %v1708
            %v1717 = vadd.f32 %v1638, %v1709
            %v1718 = vadd.f32 %v1639, %v1710
            %v1719 = vadd.f32 %v1640, %v1711
            %v1720 = vadd.f32 %v1641, %v1712
            %v1721 = vadd.f32 %v1642, %v1713
            %v1722 = vadd.f32 %v1643, %v1714
            %vm1723 = vcmp.gt.f32.partialorder %v1715, 0.0
            %vm1724 = vcmp.gt.f32.partialorder %v1716, 0.0
            %vm1725 = vcmp.gt.f32.partialorder %v1717, 0.0
            %vm1726 = vcmp.gt.f32.partialorder %v1718, 0.0
            %vm1727 = vcmp.gt.f32.partialorder %v1719, 0.0
            %vm1728 = vcmp.gt.f32.partialorder %v1720, 0.0
            %vm1729 = vcmp.gt.f32.partialorder %v1721, 0.0
            %vm1730 = vcmp.gt.f32.partialorder %v1722, 0.0
            %v1731 = vmul.f32 %v1715, 1.442695
            %v1732 = vpow.pop %v1731
            %v1733 = vmul.f32 %v1716, 1.442695
            %v1734 = vpow.pop %v1733
            %v1735 = vmul.f32 %v1717, 1.442695
            %v1736 = vpow.pop %v1735
            %v1737 = vmul.f32 %v1718, 1.442695
            %v1738 = vpow.pop %v1737
            %v1739 = vmul.f32 %v1719, 1.442695
            %v1740 = vpow.pop %v1739
            %v1741 = vmul.f32 %v1720, 1.442695
            %v1742 = vpow.pop %v1741
            %v1743 = vmul.f32 %v1721, 1.442695
            %v1744 = vpow.pop %v1743
            %v1745 = vmul.f32 %v1722, 1.442695
            %v1746 = vpow.pop %v1745
            %v1747 = vsub.f32 %v1732, 1.0
            %v1748 = vsub.f32 %v1734, 1.0
            %v1749 = vsub.f32 %v1736, 1.0
            %v1750 = vsub.f32 %v1738, 1.0
            %v1751 = vsub.f32 %v1740, 1.0
            %v1752 = vsub.f32 %v1742, 1.0
            %v1753 = vsub.f32 %v1744, 1.0
            %v1754 = vsub.f32 %v1746, 1.0
            %v1755 = vmul.f32 %v1747, 1.1111112
            %v1756 = vmul.f32 %v1748, 1.1111112
            %v1757 = vmul.f32 %v1749, 1.1111112
            %v1758 = vmul.f32 %v1750, 1.1111112
            %v1759 = vmul.f32 %v1751, 1.1111112
            %v1760 = vmul.f32 %v1752, 1.1111112
            %v1761 = vmul.f32 %v1753, 1.1111112
            %v1762 = vmul.f32 %v1754, 1.1111112
            %v1763 = vsel %vm1723, %v1715, %v1755
            %v1764 = vsel %vm1724, %v1716, %v1756
            %v1765 = vsel %vm1725, %v1717, %v1757
            %v1766 = vsel %vm1726, %v1718, %v1758
            %v1767 = vsel %vm1727, %v1719, %v1759
            %v1768 = vsel %vm1728, %v1720, %v1760
            %v1769 = vsel %vm1729, %v1721, %v1761
            %v1770 = vsel %vm1730, %v1722, %v1762
            %1771 = vst [vmem:[#allocation7] sm:$0xff] %v1763
            %1772 = vst [vmem:[#allocation7 + $0x8] sm:$0xff] %v1764
            %1773 = vst [vmem:[#allocation7 + $0x10] sm:$0xff] %v1765
            %1774 = vst [vmem:[#allocation7 + $0x18] sm:$0xff] %v1766
            %1775 = vst [vmem:[#allocation7 + $0x20] sm:$0xff] %v1767
            %1776 = vst [vmem:[#allocation7 + $0x28] sm:$0xff] %v1768
            %1777 = vst [vmem:[#allocation7 + $0x30] sm:$0xff] %v1769
            %1778 = vst [vmem:[#allocation7 + $0x38] sm:$0xff] %v1770
          $region72: #{tpu_custom_call.1} parent=63 // pred_fallthru
            _
        $region64: #{tpu_custom_call.1} parent=39 // pred_fallthru
          _
        // Predicated region
        $region73: #{tpu_custom_call.1} parent=39 // pred_check
          %p1779 = pneg %p162
        $region74: #{tpu_custom_call.1} parent=39 // pred_check_branch
          %1781 = sbr.rel (%p1779) target = $region76
        $region75: #{tpu_custom_call.1} parent=39 // pred_region
          %1783 = vsyncadd [#allocation6], 0
          %s1784 = sshll.u32 [#allocation7], 4
          %s1785 = int_to_ptr.vmem [resolvable:$true] %s1784
          %s1786 = sshll.u32 %s5, 4
          %s1787 = int_to_ptr.hbm [resolvable:$true] %s1786
          %1792 = dma.vmem_to_hbm [thread:$0]  %s1785, 1024, %s1787, [#allocation6], 256, 256, 16
        $region76: #{tpu_custom_call.1} parent=39 // pred_fallthru
          _
        // Predicated region
        $region77: #{tpu_custom_call.1} parent=39 // pred_check
          %p1793 = pneg %p162
        $region78: #{tpu_custom_call.1} parent=39 // pred_check_branch
          %1795 = sbr.rel (%p1793) target = $region80
        $region79: #{tpu_custom_call.1} parent=39 // pred_region
          %1797 = dma.done [#allocation6], 1024
        $region80: #{tpu_custom_call.1} parent=39 // pred_fallthru
          _
      $region40: #{tpu_custom_call.1} parent=5 // pred_fallthru
        _
      %p1798 = scmp.le.s32.totalorder 2, %s15
      // Predicated region
      $region81: #{tpu_custom_call.1} parent=5 // pred_check
        %p1799 = pneg %p1798
      $region82: #{tpu_custom_call.1} parent=5 // pred_check_branch
        %1801 = sbr.rel (%p1799) target = $region84
      $region83: #{tpu_custom_call.1} parent=5 // pred_region
        %s1802 = ssub.s32 %s15, 2
      $region84: #{tpu_custom_call.1} parent=5 // pred_fallthru
        _
    $region6: #{tpu_custom_call.1} parent=1 // loop_footer
      %s19 = sadd.s32 1, %s15
    $region7: #{tpu_custom_call.1} parent=1 // loop_footer_branch
      %14 = sbr.rel target = $region3
    $region8: #{tpu_custom_call.1} parent=1 // loop_exit
      _
    %1803 = vsyncpa [#allocation5], 1
    %s1804 = scalar_lea.sflag [#allocation5], 1
    %1805 = vsyncpa %s1804, 1
    %1806 = vsyncpa [#allocation6], 1
    %s1807 = scalar_lea.sflag [#allocation6], 1
    %1808 = vsyncpa %s1807, 1

</llo_original>
